<compile_context>
chip_gen: v7x
topology: tpu7x:2x2x1
jax: 0.10.0
libtpu: 0.0.40
codegen_flags: <defaults>
</compile_context>

<pallas_src>
import functools
import math

import jax
import jax.numpy as jnp
import numpy as np
from jax import lax
from jax.experimental import pallas as pl
from jax.experimental.pallas import tpu as pltpu

PADDING_VALUE = -1000000000.0


@functools.lru_cache(maxsize=None)
def _mxu_tile():
    """128-wide MXU on <=v5, 256 on v6e/v7x."""
    try:
        kind = jax.devices()[0].device_kind.lower()
    except Exception:
        return 256
    return 128 if any(v in kind for v in ("v2", "v3", "v4", "v5")) else 256


def _fit(dim, *prefs):
    """Largest preferred tile that evenly divides dim, else the full dim."""
    for p in prefs:
        if dim >= p and dim % p == 0:
            return p
    return dim


# ------------------------- tiled linear (y = x @ w.T) ----------------------- #

def _linear_kernel(x_ref, w_ref, o_ref, acc_ref):
    @pl.when(pl.program_id(2) == 0)
    def _():
        acc_ref[...] = jnp.zeros_like(acc_ref)

    # x:(tm,tk) bf16, w:(tn,tk) bf16 -> contract last dims, f32 accumulation.
    acc_ref[...] += lax.dot_general(
        x_ref[...], w_ref[...],
        dimension_numbers=(((1,), (1,)), ((), ())),
        preferred_element_type=jnp.float32)

    @pl.when(pl.program_id(2) == pl.num_programs(2) - 1)
    def _():
        o_ref[...] = acc_ref[...].astype(o_ref.dtype)


def pallas_linear(x, w, out_dtype=None):
    """y = x @ w.T (torch nn.Linear, bias=False). x:(M,K), w:(N,K) kept as-is."""
    M, K = x.shape
    N = w.shape[0]
    out_dtype = x.dtype if out_dtype is None else out_dtype
    mxu = _mxu_tile()
    tm = _fit(M, mxu, 128, 64, 32, 16, 8)
    tn = _fit(N, mxu, 128, 64, 32, 16, 8)
    tk = _fit(K, 2 * mxu, mxu, 128, 64, 32, 16, 8)
    grid = (M // tm, N // tn, K // tk)
    return pl.pallas_call(
        _linear_kernel,
        out_shape=jax.ShapeDtypeStruct((M, N), out_dtype),
        grid=grid,
        in_specs=[
            pl.BlockSpec((tm, tk), lambda i, j, k: (i, k)),
            pl.BlockSpec((tn, tk), lambda i, j, k: (j, k)),
        ],
        out_specs=pl.BlockSpec((tm, tn), lambda i, j, k: (i, j)),
        scratch_shapes=[pltpu.VMEM((tm, tn), jnp.float32)],
        compiler_params=pltpu.CompilerParams(
            dimension_semantics=("parallel", "parallel", "arbitrary")),
    )(x, w)


# --------------- flash-style KBLaM attention (per b, h, q-tile, kv-tile) ----- #

def _kblam_flash_kernel(q_ref, q2_ref, k_ref, v_ref, kbk_ref, kbv_ref, kbb_ref,
                        o_ref, m_ref, l_ref, acc_ref, *,
                        sm_scale, kb_delta, kb_true, padding_value, tq, tkv):
    # Blocks: q/q2:(TQ,D) bf16  k/v:(TKV,D) bf16  kbk/kbv:(KB_pad,D) bf16
    #         kbb:(TQ,1) f32    o:(TQ,D) bf16
    # Scratch: m,l:(TQ,1) f32   acc:(TQ,D) f32
    i = pl.program_id(2)
    j = pl.program_id(3)
    dn = (((1,), (1,)), ((), ()))   # contract last dims -> no explicit transpose

    @pl.when(j == 0)
    def _():
        # Knowledge-base block initializes the online-softmax running state.
        # sep_query_head: kb scores use q_proj_new, shifted by -log(KB)+log(scale).
        s_kb = lax.dot_general(q2_ref[...], kbk_ref[...], dn,
                               preferred_element_type=jnp.float32)
        s_kb = s_kb * sm_scale + kb_delta + kbb_ref[...]
        kb_pad = kbk_ref.shape[0]
        if kb_pad != kb_true:          # static: mask padded kb columns
            col = lax.broadcasted_iota(jnp.int32, s_kb.shape, 1)
            s_kb = jnp.where(col < kb_true, s_kb, padding_value)
        m = jnp.max(s_kb, axis=-1, keepdims=True)
        p = jnp.exp(s_kb - m)
        m_ref[...] = m
        l_ref[...] = jnp.sum(p, axis=-1, keepdims=True)
        acc_ref[...] = jnp.dot(p.astype(kbv_ref.dtype), kbv_ref[...],
                               preferred_element_type=jnp.float32)

    # Causal skip: a KV tile strictly above the diagonal contributes exactly 0.
    @pl.when(j * tkv < (i + 1) * tq)
    def _():
        s = lax.dot_general(q_ref[...], k_ref[...], dn,
                            preferred_element_type=jnp.float32)
        s = s * sm_scale
        q_pos = i * tq + lax.broadcasted_iota(jnp.int32, s.shape, 0)
        k_pos = j * tkv + lax.broadcasted_iota(jnp.int32, s.shape, 1)
        s = jnp.where(q_pos >= k_pos, s, padding_value)

        m_prev = m_ref[...]
        m_new = jnp.maximum(m_prev, jnp.max(s, axis=-1, keepdims=True))
        alpha = jnp.exp(m_prev - m_new)
        p = jnp.exp(s - m_new)
        l_ref[...] = alpha * l_ref[...] + jnp.sum(p, axis=-1, keepdims=True)
        acc_ref[...] = alpha * acc_ref[...] + jnp.dot(
            p.astype(v_ref.dtype), v_ref[...], preferred_element_type=jnp.float32)
        m_ref[...] = m_new

    @pl.when(j == pl.num_programs(3) - 1)
    def _():
        # Exact division (review: avoid approx reciprocal in the normalization).
        o_ref[...] = (acc_ref[...] / l_ref[...]).astype(o_ref.dtype)


def pallas_kblam_attention(q, q2, k, v, kbk, kbv, kb_bias, *,
                           sm_scale, kb_delta, kb_true, n_rep,
                           padding_value=PADDING_VALUE):
    """q/q2: (B,S,NH*D) bf16, k/v: (B,S,NKV*D) bf16, kbk/kbv: (NH,KB_pad,D) bf16,
    kb_bias: (B,S,1) f32.  Returns (B, S, NH*D) in q.dtype (merged-head layout)."""
    B, S, QD = q.shape
    NH, KB_pad, D = kbk.shape
    assert QD == NH * D
    mxu = _mxu_tile()
    tq = _fit(S, mxu, 128, 64, 32, 16, 8)
    tkv = _fit(S, mxu, 128, 64, 32, 16, 8)
    n_q, n_kv = S // tq, S // tkv
    grid = (B, NH, n_q, n_kv)

    def q_map(b, h, i, j):
        return (b, i, h)

    def kv_map(b, h, i, j):
        # Clamp to the last causally-needed KV tile so skipped steps re-use the
        # already-resident block (no DMA for fully-masked tiles).
        last = ((i + 1) * tq - 1) // tkv
        return (b, jnp.minimum(j, last), h // n_rep)

    def kb_map(b, h, i, j):
        return (h, 0, 0)

    def bias_map(b, h, i, j):
        return (b, i, 0)

    kernel = functools.partial(
        _kblam_flash_kernel, sm_scale=sm_scale, kb_delta=kb_delta,
        kb_true=kb_true, padding_value=padding_value, tq=tq, tkv=tkv)

    return pl.pallas_call(
        kernel,
        out_shape=jax.ShapeDtypeStruct((B, S, QD), q.dtype),
        grid=grid,
        in_specs=[
            pl.BlockSpec((None, tq, D), q_map),        # q   (head slice of last dim)
            pl.BlockSpec((None, tq, D), q_map),        # q2
            pl.BlockSpec((None, tkv, D), kv_map),      # k   (GQA alias, causal-clamped)
            pl.BlockSpec((None, tkv, D), kv_map),      # v
            pl.BlockSpec((None, KB_pad, D), kb_map),   # kb_key
            pl.BlockSpec((None, KB_pad, D), kb_map),   # kb_value
            pl.BlockSpec((None, tq, 1), bias_map),     # padded-row bias for kb cols
        ],
        out_specs=pl.BlockSpec((None, tq, D), q_map),  # merged-head (B,S,NH*D) layout
        scratch_shapes=[
            pltpu.VMEM((tq, 1), jnp.float32),          # running max
            pltpu.VMEM((tq, 1), jnp.float32),          # running denom
            pltpu.VMEM((tq, D), jnp.float32),          # running numerator
        ],
        compiler_params=pltpu.CompilerParams(
            dimension_semantics=("parallel", "parallel", "parallel", "arbitrary"),
            vmem_limit_bytes=64 * 1024 * 1024),
    )(q, q2, k, v, kbk, kbv, kb_bias)


# ------------------------------ JAX glue ----------------------------------- #

def rope_cos_sin(position_ids, head_dim, rope_theta):
    inv_freq = 1.0 / (rope_theta ** (jnp.arange(0, head_dim, 2, dtype=jnp.float32) / head_dim))
    freqs = position_ids.astype(jnp.float32)[..., None] * inv_freq[None, None, :]
    emb = jnp.concatenate([freqs, freqs], axis=-1)
    return jnp.cos(emb), jnp.sin(emb)


def rotate_half(x):
    d = x.shape[-1] // 2
    return jnp.concatenate([-x[..., d:], x[..., :d]], axis=-1)


def kblam_forward(hidden_states, attention_mask, position_ids, kb_key, kb_value,
                  params, cfg):
    B, S, H = hidden_states.shape
    NH, NKV, D = cfg["num_heads"], cfg["num_kv_heads"], cfg["head_dim"]
    n_rep = NH // NKV
    sm_scale = 1.0 / math.sqrt(D)
    cd = jnp.bfloat16

    # Fused QKV(+Q2) projection, bf16 operands, f32 accumulation.
    # TODO(synk): build w_fused once at parameter-load time in a real model.
    w_fused = jnp.concatenate(
        [params["wq"], params["wq2"], params["wk"], params["wv"]], axis=0).astype(cd)
    x2d = hidden_states.reshape(B * S, H).astype(cd)
    qkv = pallas_linear(x2d, w_fused)                     # (B*S, 2*NH*D + 2*NKV*D) bf16

    oq, ok = NH * D, NKV * D
    q = qkv[:, :oq].reshape(B, S, NH, D)
    q2 = qkv[:, oq:2 * oq].reshape(B, S, oq)              # q_proj_new: no RoPE
    k = qkv[:, 2 * oq:2 * oq + ok].reshape(B, S, NKV, D)
    v = qkv[:, 2 * oq + ok:].reshape(B, S, ok)

    # RoPE in packed (B,S,heads,D) layout (no (B,NH,S,D) transpose materialized).
    cos, sin = rope_cos_sin(position_ids, D, cfg["rope_theta"])
    cos = cos.astype(cd)[:, :, None, :]
    sin = sin.astype(cd)[:, :, None, :]
    q = (q * cos + rotate_half(q) * sin).reshape(B, S, oq)
    k = (k * cos + rotate_half(k) * sin).reshape(B, S, ok)

    # Knowledge-base keys/values: (KB, NH*D) -> (NH, KB_pad, D), padded to 128 lanes.
    KB = kb_key.shape[0]
    KB_pad = ((KB + 127) // 128) * 128
    kbk = kb_key.reshape(KB, NH, D).transpose(1, 0, 2)
    kbv = kb_value.reshape(KB, NH, D).transpose(1, 0, 2)
    if KB_pad != KB:
        pad = ((0, 0), (0, KB_pad - KB), (0, 0))
        kbk = jnp.pad(kbk, pad)
        kbv = jnp.pad(kbv, pad)
    kbk = kbk.astype(cd)
    kbv = kbv.astype(cd)

    # Per-query-row "fully padded" flag -> additive bias on the kb columns
    # (matches the reference for standard causal masks).
    padded = jnp.all(attention_mask < 0, axis=-1)                    # (B, 1, S)
    kb_bias = jnp.where(padded, PADDING_VALUE, 0.0).astype(jnp.float32)
    kb_bias = kb_bias.transpose(0, 2, 1)                             # (B, S, 1)

    kb_delta = float(-np.log(KB) + np.log(cfg["kb_scale_factor"]))
    attn = pallas_kblam_attention(q, q2, k, v, kbk, kbv, kb_bias,
                                  sm_scale=sm_scale, kb_delta=kb_delta,
                                  kb_true=KB, n_rep=n_rep)            # (B,S,NH*D) bf16

    # o_proj: attention output is already in merged-head layout -> plain matmul.
    out = pallas_linear(attn.reshape(B * S, NH * D), params["wo"].astype(cd),
                        out_dtype=hidden_states.dtype)
    return out.reshape(B, S, H)


# ------------------ pure-JAX reference (same bf16/f32 policy) --------------- #

def kblam_forward_reference(hidden_states, attention_mask, position_ids, kb_key,
                            kb_value, params, cfg):
    B, S, H = hidden_states.shape
    NH, NKV, D = cfg["num_heads"], cfg["num_kv_heads"], cfg["head_dim"]
    cd = jnp.bfloat16
    x2d = hidden_states.astype(cd).reshape(B * S, H)

    def lin(x, w, out_dtype=cd):
        return jnp.dot(x, w.astype(cd).T,
                       preferred_element_type=jnp.float32).astype(out_dtype)

    q = lin(x2d, params["wq"]).reshape(B, S, NH, D).transpose(0, 2, 1, 3)
    q2 = lin(x2d, params["wq2"]).reshape(B, S, NH, D).transpose(0, 2, 1, 3)
    k = lin(x2d, params["wk"]).reshape(B, S, NKV, D).transpose(0, 2, 1, 3)
    v = lin(x2d, params["wv"]).reshape(B, S, NKV, D).transpose(0, 2, 1, 3)

    cos, sin = rope_cos_sin(position_ids, D, cfg["rope_theta"])
    cos = cos.astype(cd)[:, None, :, :]
    sin = sin.astype(cd)[:, None, :, :]
    q = q * cos + rotate_half(q) * sin
    k = k * cos + rotate_half(k) * sin

    n_rep = NH // NKV
    k = jnp.repeat(k, n_rep, axis=1)
    v = jnp.repeat(v, n_rep, axis=1)

    KB = kb_key.shape[0]
    kbk = jnp.broadcast_to(
        kb_key.astype(cd).reshape(KB, NH, D).transpose(1, 0, 2)[None], (B, NH, KB, D))
    kbv = jnp.broadcast_to(
        kb_value.astype(cd).reshape(KB, NH, D).transpose(1, 0, 2)[None], (B, NH, KB, D))

    key_cat = jnp.concatenate([kbk, k], axis=2)
    val_cat = jnp.concatenate([kbv, v], axis=2)

    padding = jnp.all(attention_mask < 0, axis=-1, keepdims=True)    # (B,1,S,1)
    kb_mask = jnp.where(padding, PADDING_VALUE, 0.0) * jnp.ones((B, 1, S, KB))
    mask_cat = jnp.concatenate([kb_mask, attention_mask], axis=-1)

    scale = 1.0 / math.sqrt(D)
    attn = jnp.einsum("bhqd,bhkd->bhqk", q, key_cat,
                      preferred_element_type=jnp.float32) * scale
    attn2 = jnp.einsum("bhqd,bhkd->bhqk", q2, kbk,
                       preferred_element_type=jnp.float32) * scale
    attn = attn[..., KB:]
    attn2 = attn2 - np.log(KB) + np.log(cfg["kb_scale_factor"])
    attn = jnp.concatenate([attn2, attn], axis=-1) + mask_cat
    p = jax.nn.softmax(attn.astype(jnp.float32), axis=-1).astype(cd)
    out = jnp.einsum("bhqk,bhkd->bhqd", p, val_cat,
                     preferred_element_type=jnp.float32).astype(cd)
    out = out.transpose(0, 2, 1, 3).reshape(B * S, NH * D)
    return lin(out, params["wo"], out_dtype=hidden_states.dtype).reshape(B, S, H)


# --------------------------------- main ------------------------------------ #

if __name__ == "__main__":
    # Small but TPU-aligned shapes (head_dim=128 so head slices sit on lane tiles).
    B, S = 2, 512
    NH, NKV, D = 4, 2, 128
    H = NH * D
    KB = 200     # not a multiple of 128 -> exercises the kb padding/mask path

    cfg = dict(num_heads=NH, num_kv_heads=NKV, head_dim=D,
               rope_theta=10000.0, kb_scale_factor=10.0)

    key = jax.random.PRNGKey(0)
    ks = jax.random.split(key, 8)
    params = {
        "wq": 0.05 * jax.random.normal(ks[0], (NH * D, H), jnp.float32),
        "wq2": 0.05 * jax.random.normal(ks[1], (NH * D, H), jnp.float32),
        "wk": 0.05 * jax.random.normal(ks[2], (NKV * D, H), jnp.float32),
        "wv": 0.05 * jax.random.normal(ks[3], (NKV * D, H), jnp.float32),
        "wo": 0.05 * jax.random.normal(ks[4], (H, NH * D), jnp.float32),
        # score_shift exists in the module but is unused in forward.
    }

    hidden_states = jax.random.normal(ks[5], (B, S, H), jnp.float32)
    kb_key = jax.random.normal(ks[6], (KB, NH * D), jnp.float32)
    kb_value = jax.random.normal(ks[7], (KB, NH * D), jnp.float32)
    position_ids = jnp.broadcast_to(jnp.arange(S, dtype=jnp.int32)[None], (B, S))

    # Additive causal mask (0 on/below diagonal, -1e9 above).
    causal = jnp.where(jnp.arange(S)[:, None] >= jnp.arange(S)[None, :],
                       0.0, PADDING_VALUE)
    attention_mask = jnp.broadcast_to(causal[None, None], (B, 1, S, S)).astype(jnp.float32)

    out = kblam_forward(hidden_states, attention_mask, position_ids,
                        kb_key, kb_value, params, cfg)
    out = jax.block_until_ready(out)

    ref = kblam_forward_reference(hidden_states, attention_mask, position_ids,
                                  kb_key, kb_value, params, cfg)
    ref = jax.block_until_ready(ref)

    assert out.shape == (B, S, H)
    out_np = np.asarray(out, dtype=np.float32)
    ref_np = np.asarray(ref, dtype=np.float32)
    # Tolerance covers the bf16-operand / f32-accumulation policy differences
    # (placement of the probability cast, accumulation order).
    assert np.allclose(out_np, ref_np, rtol=2e-2, atol=2e-2), (
        float(np.max(np.abs(out_np - ref_np))))
    print("KERNEL_OK")
</pallas_src>

<mosaic_0001>
module attributes {stable_mosaic.version = 11 : i64} {
  func.func @_linear_kernel(%arg0: i32, %arg1: i32, %arg2: i32, %arg3: memref<256x512xbf16, #tpu.memory_space<vmem>>, %arg4: memref<256x512xbf16, #tpu.memory_space<vmem>>, %arg5: memref<256x256xbf16, #tpu.memory_space<vmem>>, %arg6: memref<256x256xf32, #tpu.memory_space<vmem>>) attributes {dimension_semantics = [#tpu.dimension_semantics<parallel>, #tpu.dimension_semantics<parallel>, #tpu.dimension_semantics<arbitrary>], iteration_bounds = array<i64: 4, 6, 1>, scalar_prefetch = 0 : i64, scratch_operands = 1 : i64, tpu.core_type = #tpu.core_type<tc>, window_params = [{transform_indices = @transform_0, window_bounds = array<i64: 256, 512>}, {transform_indices = @transform_1, window_bounds = array<i64: 256, 512>}, {transform_indices = @transform_2, window_bounds = array<i64: 256, 256>}]} {
    %c0_i32 = arith.constant 0 : i32
    %0 = arith.cmpi eq, %arg2, %c0_i32 : i32
    %1 = arith.extui %0 : i1 to i32
    %c0_i32_0 = arith.constant 0 : i32
    %2 = arith.cmpi ne, %1, %c0_i32_0 : i32
    scf.if %2 {
      %cst_10 = arith.constant 0.000000e+00 : f32
      %12 = vector.broadcast %cst_10 : f32 to vector<256x256xf32>
      %c0_11 = arith.constant 0 : index
      %c0_12 = arith.constant 0 : index
      %13 = vector.load %arg6[%c0_11, %c0_12] : memref<256x256xf32, #tpu.memory_space<vmem>>, vector<256x256xf32>
      tpu.vector_store %arg6[%c0_11, %c0_12], %12 {strides = array<i32>} : memref<256x256xf32, #tpu.memory_space<vmem>>, vector<256x256xf32>,
    } else {
    }
    %c0 = arith.constant 0 : index
    %c0_1 = arith.constant 0 : index
    %3 = vector.load %arg6[%c0, %c0_1] : memref<256x256xf32, #tpu.memory_space<vmem>>, vector<256x256xf32>
    %c0_2 = arith.constant 0 : index
    %c0_3 = arith.constant 0 : index
    %4 = vector.load %arg3[%c0_2, %c0_3] : memref<256x512xbf16, #tpu.memory_space<vmem>>, vector<256x512xbf16>
    %c0_4 = arith.constant 0 : index
    %c0_5 = arith.constant 0 : index
    %5 = vector.load %arg4[%c0_4, %c0_5] : memref<256x512xbf16, #tpu.memory_space<vmem>>, vector<256x512xbf16>
    %cst = arith.constant dense<0.000000e+00> : vector<256x256xf32>
    %6 = tpu.matmul %4, %5, %cst {dimension_numbers = #tpu.dot_dimension_numbers<[1], [1], [0], [0], [0, 0, 1, 0], [], []>} : vector<256x512xbf16>, vector<256x512xbf16>, vector<256x256xf32> -> vector<256x256xf32>
    %7 = arith.addf %3, %6 : vector<256x256xf32>
    %c0_6 = arith.constant 0 : index
    %c0_7 = arith.constant 0 : index
    %8 = vector.load %arg6[%c0_6, %c0_7] : memref<256x256xf32, #tpu.memory_space<vmem>>, vector<256x256xf32>
    tpu.vector_store %arg6[%c0_6, %c0_7], %7 {strides = array<i32>} : memref<256x256xf32, #tpu.memory_space<vmem>>, vector<256x256xf32>,
    %c0_i32_8 = arith.constant 0 : i32
    %9 = arith.cmpi eq, %arg2, %c0_i32_8 : i32
    %10 = arith.extui %9 : i1 to i32
    %c0_i32_9 = arith.constant 0 : i32
    %11 = arith.cmpi ne, %10, %c0_i32_9 : i32
    scf.if %11 {
      %c0_10 = arith.constant 0 : index
      %c0_11 = arith.constant 0 : index
      %12 = vector.load %arg6[%c0_10, %c0_11] : memref<256x256xf32, #tpu.memory_space<vmem>>, vector<256x256xf32>
      %13 = arith.truncf %12 : vector<256x256xf32> to vector<256x256xbf16>
      %c0_12 = arith.constant 0 : index
      %c0_13 = arith.constant 0 : index
      %14 = vector.load %arg5[%c0_12, %c0_13] : memref<256x256xbf16, #tpu.memory_space<vmem>>, vector<256x256xbf16>
      tpu.vector_store %arg5[%c0_12, %c0_13], %13 {strides = array<i32>} : memref<256x256xbf16, #tpu.memory_space<vmem>>, vector<256x256xbf16>,
    } else {
    }
    return
  }
  func.func @transform_0(%arg0: i32, %arg1: i32, %arg2: i32) -> (i32, i32) {
    %c0_i32 = arith.constant 0 : i32
    return %arg0, %arg2 : i32, i32
  }
  func.func @transform_1(%arg0: i32, %arg1: i32, %arg2: i32) -> (i32, i32) {
    %c0_i32 = arith.constant 0 : i32
    return %arg1, %arg2 : i32, i32
  }
  func.func @transform_2(%arg0: i32, %arg1: i32, %arg2: i32) -> (i32, i32) {
    %c0_i32 = arith.constant 0 : i32
    return %arg0, %arg1 : i32, i32
  }
}

</mosaic_0001>

<llo_original>
// kernel: tpu_custom_call.1
$region0: #{tpu_custom_call.1}
  #allocation0 [shape = 'u32[]', space=smem, size = 0x4, offset = 0x4, fixed_abs, tag = 'smem constant byte address 0x4 - core index']
  #allocation1 [shape = 'u32[144,128]{1,0:T(1,128)}', space=vmem, size = 0x12000, scoped, tag = 'internal scratch']
  #allocation2 [shape = 'f32[256,256]{1,0:T(8,128)}', space=vmem, size = 0x40000, scoped, tag = 'scratch operand']
  %s0 = inlined_call_operand.hbm [shape: bf16[1024,512], index: 0, kind: input, shape index: {}]
  %s1 = inlined_call_operand.hbm [shape: bf16[1536,512], index: 1, kind: input, shape index: {}]
  %s2 = inlined_call_operand.hbm [shape: bf16[1024,1536], index: 2, kind: output, shape index: {}]
  %s3 = sld [smem:[#allocation0]]
  $region57: #{tpu_custom_call.1} parent=0
    _
  %s5 = ssub.s32 1, %s3
  %s6 = scalar_select 0, %s5, %s3
  $region1: #{tpu_custom_call.1} parent=0
    #allocation3 [shape = 'u8[524288]{0}', space=vmem, size = 0x80000, scoped, tag = 'input window, operand 0']
    #allocation4 [shape = 's32[2]{0}', space=sflag, size = 0x8, scoped, tag = 'scoped memory for tpu_custom_call.1']
    #allocation5 [shape = 's32[2]{0}', space=sflag, size = 0x8, scoped, tag = 'scoped memory for tpu_custom_call.1']
    #allocation6 [shape = 'u8[524288]{0}', space=vmem, size = 0x80000, scoped, tag = 'input window, operand 1']
    #allocation7 [shape = 's32[2]{0}', space=sflag, size = 0x8, scoped, tag = 'scoped memory for tpu_custom_call.1']
    #allocation8 [shape = 'u8[262144]{0}', space=vmem, size = 0x40000, scoped, tag = 'output window, operand 0']
    %7 = vsyncpa [#allocation4], 0
    %s8 = scalar_lea.sflag [#allocation4], 1
    %9 = vsyncpa %s8, 0
    %10 = vsyncpa [#allocation7], 0
    %s11 = scalar_lea.sflag [#allocation7], 1
    %12 = vsyncpa %s11, 0
    %13 = vsyncpa [#allocation5], 0
    %s14 = scalar_lea.sflag [#allocation5], 1
    %15 = vsyncpa %s14, 0
    loop: start=0, step=1, limit=26
    $region2: #{tpu_custom_call.1} parent=1 // loop_pre_header
      _
    $region3: #{tpu_custom_call.1} parent=1 // loop_header
      %s17 = sphi 0, %s21
      %p18 = scmp.ge.s32.totalorder %s17, 26
      %s24 = sphi 0, %s43
      %s25 = sphi 0, %s39
      %s26 = sphi 0, %s35
      %s27 = sphi 0, %s24
      %s28 = sphi 0, %s25
      %s29 = sphi 0, %s26
      %s30 = sphi 0, %s27
      %s31 = sphi 0, %s28
      %s32 = sphi 0, %s29
      %s48 = sphi 0, %s50
      %s51 = sphi 0, %s48
      %s52 = sphi 0, %s51
      %s68 = sphi 0, %s52
      %s76 = sphi 0, %s78
      %s79 = sphi 0, %s76
      %s80 = sphi 0, %s79
      %s96 = sphi 0, %s80
      %s104 = sphi 0, %s106
      %s107 = sphi 0, %s104
      %s108 = sphi 0, %s107
      %s124 = sphi 0, %s108
    $region4: #{tpu_custom_call.1} parent=1 // loop_header_branch
      %20 = sbr.rel (%p18) target = $region8
    $region5: #{tpu_custom_call.1} parent=1 // loop_body
      %s22 = ssub.s32 %s17, 1
      %s23 = ssub.s32 %s17, 2
      %s33 = sadd.s32 1, %s26
      %p34 = scmp.ge.s32.totalorder %s33, 1
      %s35 = scalar_select %p34, 0, %s33
      %s36 = sadd.s32 1, %s25
      %s37 = scalar_select %p34, %s36, %s25
      %p38 = scmp.ge.s32.totalorder %s37, 6
      %s39 = scalar_select %p38, 0, %s37
      %s40 = sadd.s32 1, %s24
      %s41 = scalar_select %p38, %s40, %s24
      %p42 = scmp.ge.s32.totalorder %s41, 4
      %s43 = scalar_select %p42, 0, %s41
      %s44 = ssub.s32 %s24, %s43
      %s45 = ssub.s32 %s26, %s35
      %s46 = sor.u32 %s44, %s45
      %p47 = scmp.eq.s32.totalorder %s46, 0
      %s49 = sadd.s32 %s48, 1
      %s50 = scalar_select %p47, %s48, %s49
      %p53 = pneg %p47
      %p54 = scmp.eq.s32.totalorder %s17, 23
      %p55 = por %p53, %p54
      %p56 = scmp.ne.s32.totalorder %s48, %s51
      %p57 = scmp.eq.s32.totalorder %s17, 0
      %p58 = por %p56, %p57
      %p59 = scmp.ne.s32.totalorder %s48, %s51
      %p60 = scmp.eq.s32.totalorder %s22, 23
      %p61 = por %p59, %p60
      %p62 = scmp.ne.s32.totalorder %s51, %s52
      %p63 = scmp.eq.s32.totalorder %s22, 0
      %p64 = por %p62, %p63
      %p65 = scmp.ne.s32.totalorder %s51, %s52
      %p66 = scmp.eq.s32.totalorder %s23, 23
      %p67 = por %p65, %p66
      %p69 = scmp.ne.s32.totalorder %s52, %s68
      %p70 = scmp.eq.s32.totalorder %s23, 0
      %p71 = por %p69, %p70
      %s72 = ssub.s32 %s25, %s39
      %s73 = ssub.s32 %s26, %s35
      %s74 = sor.u32 %s72, %s73
      %p75 = scmp.eq.s32.totalorder %s74, 0
      %s77 = sadd.s32 %s76, 1
      %s78 = scalar_select %p75, %s76, %s77
      %p81 = pneg %p75
      %p82 = scmp.eq.s32.totalorder %s17, 23
      %p83 = por %p81, %p82
      %p84 = scmp.ne.s32.totalorder %s76, %s79
      %p85 = scmp.eq.s32.totalorder %s17, 0
      %p86 = por %p84, %p85
      %p87 = scmp.ne.s32.totalorder %s76, %s79
      %p88 = scmp.eq.s32.totalorder %s22, 23
      %p89 = por %p87, %p88
      %p90 = scmp.ne.s32.totalorder %s79, %s80
      %p91 = scmp.eq.s32.totalorder %s22, 0
      %p92 = por %p90, %p91
      %p93 = scmp.ne.s32.totalorder %s79, %s80
      %p94 = scmp.eq.s32.totalorder %s23, 23
      %p95 = por %p93, %p94
      %p97 = scmp.ne.s32.totalorder %s80, %s96
      %p98 = scmp.eq.s32.totalorder %s23, 0
      %p99 = por %p97, %p98
      %s100 = ssub.s32 %s24, %s43
      %s101 = ssub.s32 %s25, %s39
      %s102 = sor.u32 %s100, %s101
      %p103 = scmp.eq.s32.totalorder %s102, 0
      %s105 = sadd.s32 %s104, 1
      %s106 = scalar_select %p103, %s104, %s105
      %p109 = pneg %p103
      %p110 = scmp.eq.s32.totalorder %s17, 23
      %p111 = por %p109, %p110
      %p112 = scmp.ne.s32.totalorder %s104, %s107
      %p113 = scmp.eq.s32.totalorder %s17, 0
      %p114 = por %p112, %p113
      %p115 = scmp.ne.s32.totalorder %s104, %s107
      %p116 = scmp.eq.s32.totalorder %s22, 23
      %p117 = por %p115, %p116
      %p118 = scmp.ne.s32.totalorder %s107, %s108
      %p119 = scmp.eq.s32.totalorder %s22, 0
      %p120 = por %p118, %p119
      %p121 = scmp.ne.s32.totalorder %s107, %s108
      %p122 = scmp.eq.s32.totalorder %s23, 23
      %p123 = por %p121, %p122
      %p125 = scmp.ne.s32.totalorder %s108, %s124
      %p126 = scmp.eq.s32.totalorder %s23, 0
      %p127 = por %p125, %p126
      %p128 = scmp.le.s32.totalorder 1, %s17
      %p129 = scmp.lt.s32.totalorder %s17, 25
      %p130 = pnand %p128, %p129
      %p131 = pneg %p130
      // Predicated region
      $region9: #{tpu_custom_call.1} parent=5 // pred_check
        _
      $region10: #{tpu_custom_call.1} parent=5 // pred_check_branch
        %133 = sbr.rel (%p130) target = $region12
      $region11: #{tpu_custom_call.1} parent=5 // pred_region
        %s134 = ssub.s32 %s17, 1
      $region12: #{tpu_custom_call.1} parent=5 // pred_fallthru
        _
      %p135 = scmp.lt.s32.totalorder %s17, 24
      // Predicated region
      $region13: #{tpu_custom_call.1} parent=5 // pred_check
        %p136 = pneg %p135
      $region14: #{tpu_custom_call.1} parent=5 // pred_check_branch
        %138 = sbr.rel (%p136) target = $region16
      $region15: #{tpu_custom_call.1} parent=5 // pred_region
        // Predicated region
        $region17: #{tpu_custom_call.1} parent=15 // pred_check
          %p139 = pneg %p58
        $region18: #{tpu_custom_call.1} parent=15 // pred_check_branch
          %141 = sbr.rel (%p139) target = $region20
        $region19: #{tpu_custom_call.1} parent=15 // pred_region
          %s142 = sand.u32 %s48, 1
          %s143 = scalar_lea.sflag [#allocation4], %s142
          %s144 = sand.u32 %s48, 1
          %s145 = smul.addr %s144, 512
          %s146 = scalar_lea.vmem [#allocation3], %s145
          %s147 = smul.u32 32, %s24
          %s148 = smul.u32 4, %s26
          %s150 = ssub.s32 8192, 8192
          %151 = vsyncadd %s143, %s150
          %s152 = smul.addr %s147, 4
          %s153 = sadd.s32 %s148, %s152
          %s154 = smul.addr %s153, 64
          %s155 = scalar_lea.hbm %s0, %s154
          %s156 = sshll.u32 %s146, 4
          %s157 = int_to_ptr.vmem [resolvable:$true] %s156
          %162 = dma.hbm_to_vmem [thread:$0]  %s155, 8192, %s157, %s143, 256, 256, 16
        $region20: #{tpu_custom_call.1} parent=15 // pred_fallthru
          _
        // Predicated region
        $region21: #{tpu_custom_call.1} parent=15 // pred_check
          %p163 = pneg %p86
        $region22: #{tpu_custom_call.1} parent=15 // pred_check_branch
          %165 = sbr.rel (%p163) target = $region24
        $region23: #{tpu_custom_call.1} parent=15 // pred_region
          %s166 = sand.u32 %s76, 1
          %s167 = scalar_lea.sflag [#allocation7], %s166
          %s168 = sand.u32 %s76, 1
          %s169 = smul.addr %s168, 512
          %s170 = scalar_lea.vmem [#allocation6], %s169
          %s171 = smul.u32 32, %s25
          %s172 = smul.u32 4, %s26
          %s174 = ssub.s32 8192, 8192
          %175 = vsyncadd %s167, %s174
          %s176 = smul.addr %s171, 4
          %s177 = sadd.s32 %s172, %s176
          %s178 = smul.addr %s177, 64
          %s179 = scalar_lea.hbm %s1, %s178
          %s180 = sshll.u32 %s170, 4
          %s181 = int_to_ptr.vmem [resolvable:$true] %s180
          %186 = dma.hbm_to_vmem [thread:$0]  %s179, 8192, %s181, %s167, 256, 256, 16
        $region24: #{tpu_custom_call.1} parent=15 // pred_fallthru
          _
      $region16: #{tpu_custom_call.1} parent=5 // pred_fallthru
        _
      %p187 = scmp.le.s32.totalorder 1, %s17
      %p188 = scmp.lt.s32.totalorder %s17, 25
      %p189 = pnand %p187, %p188
      %p190 = pneg %p189
      // Predicated region
      $region25: #{tpu_custom_call.1} parent=5 // pred_check
        _
      $region26: #{tpu_custom_call.1} parent=5 // pred_check_branch
        %192 = sbr.rel (%p189) target = $region28
      $region27: #{tpu_custom_call.1} parent=5 // pred_region
        %s193 = ssub.s32 %s17, 1
        %s194 = sand.u32 %s51, 1
        %s195 = scalar_lea.sflag [#allocation4], %s194
        %s196 = sand.u32 %s51, 1
        %s197 = smul.addr %s196, 512
        %s198 = scalar_lea.vmem [#allocation3], %s197
        // Predicated region
        $region29: #{tpu_custom_call.1} parent=27 // pred_check
          %p199 = pneg %p64
        $region30: #{tpu_custom_call.1} parent=27 // pred_check_branch
          %201 = sbr.rel (%p199) target = $region32
        $region31: #{tpu_custom_call.1} parent=27 // pred_region
          %202 = dma.done %s195, 8192
        $region32: #{tpu_custom_call.1} parent=27 // pred_fallthru
          _
        %s203 = sand.u32 %s79, 1
        %s204 = scalar_lea.sflag [#allocation7], %s203
        %s205 = sand.u32 %s79, 1
        %s206 = smul.addr %s205, 512
        %s207 = scalar_lea.vmem [#allocation6], %s206
        // Predicated region
        $region33: #{tpu_custom_call.1} parent=27 // pred_check
          %p208 = pneg %p92
        $region34: #{tpu_custom_call.1} parent=27 // pred_check_branch
          %210 = sbr.rel (%p208) target = $region36
        $region35: #{tpu_custom_call.1} parent=27 // pred_region
          %211 = dma.done %s204, 8192
        $region36: #{tpu_custom_call.1} parent=27 // pred_fallthru
          _
        %s212 = sand.u32 %s51, 1
        %s213 = scalar_lea.sflag [#allocation4], %s212
        %s214 = sand.u32 %s51, 1
        %s215 = smul.addr %s214, 512
        %s216 = scalar_lea.vmem [#allocation3], %s215
        %p217 = pneg %p64
        %p218 = pneg %p61
        %s219 = sand.u32 %s79, 1
        %s220 = scalar_lea.sflag [#allocation7], %s219
        %s221 = sand.u32 %s79, 1
        %s222 = smul.addr %s221, 512
        %s223 = scalar_lea.vmem [#allocation6], %s222
        %p224 = pneg %p92
        %p225 = pneg %p89
        %p226 = pneg %p120
        %p227 = pneg %p117
        %s228 = sand.u32 %s107, 1
        %s229 = scalar_lea.sflag [#allocation5], %s228
        %s230 = sand.u32 %s107, 1
        %s231 = smul.addr %s230, 256
        %s232 = scalar_lea.vmem [#allocation8], %s231
        %s233 = smul.u32 32, %s27
        %s234 = smul.u32 4, %s29
        %s235 = smul.u32 32, %s28
        %s236 = smul.u32 4, %s29
        %s237 = smul.u32 32, %s27
        %s238 = smul.u32 2, %s28
        %p239 = scmp.eq.s32.totalorder %s29, 0
        // Predicated region
        $region37: #{tpu_custom_call.1} parent=27 // pred_check
          %p240 = pneg %p239
        $region38: #{tpu_custom_call.1} parent=27 // pred_check_branch
          %242 = sbr.rel (%p240) target = $region40
        $region39: #{tpu_custom_call.1} parent=27 // pred_region
          %243 = vst [vmem:[#allocation2] sm:$0xff] 0.0
          %244 = vst [vmem:[#allocation2 + $0x8] sm:$0xff] 0.0
          %245 = vst [vmem:[#allocation2 + $0x10] sm:$0xff] 0.0
          %246 = vst [vmem:[#allocation2 + $0x18] sm:$0xff] 0.0
          %247 = vst [vmem:[#allocation2 + $0x20] sm:$0xff] 0.0
          %248 = vst [vmem:[#allocation2 + $0x28] sm:$0xff] 0.0
          %249 = vst [vmem:[#allocation2 + $0x30] sm:$0xff] 0.0
          %250 = vst [vmem:[#allocation2 + $0x38] sm:$0xff] 0.0
          %251 = vst [vmem:[#allocation2 + $0x40] sm:$0xff] 0.0
          %252 = vst [vmem:[#allocation2 + $0x48] sm:$0xff] 0.0
          %253 = vst [vmem:[#allocation2 + $0x50] sm:$0xff] 0.0
          %254 = vst [vmem:[#allocation2 + $0x58] sm:$0xff] 0.0
          %255 = vst [vmem:[#allocation2 + $0x60] sm:$0xff] 0.0
          %256 = vst [vmem:[#allocation2 + $0x68] sm:$0xff] 0.0
          %257 = vst [vmem:[#allocation2 + $0x70] sm:$0xff] 0.0
          %258 = vst [vmem:[#allocation2 + $0x78] sm:$0xff] 0.0
          %259 = vst [vmem:[#allocation2 + $0x80] sm:$0xff] 0.0
          %260 = vst [vmem:[#allocation2 + $0x88] sm:$0xff] 0.0
          %261 = vst [vmem:[#allocation2 + $0x90] sm:$0xff] 0.0
          %262 = vst [vmem:[#allocation2 + $0x98] sm:$0xff] 0.0
          %263 = vst [vmem:[#allocation2 + $0xa0] sm:$0xff] 0.0
          %264 = vst [vmem:[#allocation2 + $0xa8] sm:$0xff] 0.0
          %265 = vst [vmem:[#allocation2 + $0xb0] sm:$0xff] 0.0
          %266 = vst [vmem:[#allocation2 + $0xb8] sm:$0xff] 0.0
          %267 = vst [vmem:[#allocation2 + $0xc0] sm:$0xff] 0.0
          %268 = vst [vmem:[#allocation2 + $0xc8] sm:$0xff] 0.0
          %269 = vst [vmem:[#allocation2 + $0xd0] sm:$0xff] 0.0
          %270 = vst [vmem:[#allocation2 + $0xd8] sm:$0xff] 0.0
          %271 = vst [vmem:[#allocation2 + $0xe0] sm:$0xff] 0.0
          %272 = vst [vmem:[#allocation2 + $0xe8] sm:$0xff] 0.0
          %273 = vst [vmem:[#allocation2 + $0xf0] sm:$0xff] 0.0
          %274 = vst [vmem:[#allocation2 + $0xf8] sm:$0xff] 0.0
          %275 = vst [vmem:[#allocation2 + $0x100] sm:$0xff] 0.0
          %276 = vst [vmem:[#allocation2 + $0x108] sm:$0xff] 0.0
          %277 = vst [vmem:[#allocation2 + $0x110] sm:$0xff] 0.0
          %278 = vst [vmem:[#allocation2 + $0x118] sm:$0xff] 0.0
          %279 = vst [vmem:[#allocation2 + $0x120] sm:$0xff] 0.0
          %280 = vst [vmem:[#allocation2 + $0x128] sm:$0xff] 0.0
          %281 = vst [vmem:[#allocation2 + $0x130] sm:$0xff] 0.0
          %282 = vst [vmem:[#allocation2 + $0x138] sm:$0xff] 0.0
          %283 = vst [vmem:[#allocation2 + $0x140] sm:$0xff] 0.0
          %284 = vst [vmem:[#allocation2 + $0x148] sm:$0xff] 0.0
          %285 = vst [vmem:[#allocation2 + $0x150] sm:$0xff] 0.0
          %286 = vst [vmem:[#allocation2 + $0x158] sm:$0xff] 0.0
          %287 = vst [vmem:[#allocation2 + $0x160] sm:$0xff] 0.0
          %288 = vst [vmem:[#allocation2 + $0x168] sm:$0xff] 0.0
          %289 = vst [vmem:[#allocation2 + $0x170] sm:$0xff] 0.0
          %290 = vst [vmem:[#allocation2 + $0x178] sm:$0xff] 0.0
          %291 = vst [vmem:[#allocation2 + $0x180] sm:$0xff] 0.0
          %292 = vst [vmem:[#allocation2 + $0x188] sm:$0xff] 0.0
          %293 = vst [vmem:[#allocation2 + $0x190] sm:$0xff] 0.0
          %294 = vst [vmem:[#allocation2 + $0x198] sm:$0xff] 0.0
          %295 = vst [vmem:[#allocation2 + $0x1a0] sm:$0xff] 0.0
          %296 = vst [vmem:[#allocation2 + $0x1a8] sm:$0xff] 0.0
          %297 = vst [vmem:[#allocation2 + $0x1b0] sm:$0xff] 0.0
          %298 = vst [vmem:[#allocation2 + $0x1b8] sm:$0xff] 0.0
          %299 = vst [vmem:[#allocation2 + $0x1c0] sm:$0xff] 0.0
          %300 = vst [vmem:[#allocation2 + $0x1c8] sm:$0xff] 0.0
          %301 = vst [vmem:[#allocation2 + $0x1d0] sm:$0xff] 0.0
          %302 = vst [vmem:[#allocation2 + $0x1d8] sm:$0xff] 0.0
          %303 = vst [vmem:[#allocation2 + $0x1e0] sm:$0xff] 0.0
          %304 = vst [vmem:[#allocation2 + $0x1e8] sm:$0xff] 0.0
          %305 = vst [vmem:[#allocation2 + $0x1f0] sm:$0xff] 0.0
          %306 = vst [vmem:[#allocation2 + $0x1f8] sm:$0xff] 0.0
        $region40: #{tpu_custom_call.1} parent=27 // pred_fallthru
          _
        %v307 = vld [vmem:[#allocation2] sm:$0xff]
        %v308 = vld [vmem:[#allocation2 + $0x8] sm:$0xff]
        %v309 = vld [vmem:[#allocation2 + $0x10] sm:$0xff]
        %v310 = vld [vmem:[#allocation2 + $0x18] sm:$0xff]
        %v311 = vld [vmem:[#allocation2 + $0x20] sm:$0xff]
        %v312 = vld [vmem:[#allocation2 + $0x28] sm:$0xff]
        %v313 = vld [vmem:[#allocation2 + $0x30] sm:$0xff]
        %v314 = vld [vmem:[#allocation2 + $0x38] sm:$0xff]
        %v315 = vld [vmem:[#allocation2 + $0x40] sm:$0xff]
        %v316 = vld [vmem:[#allocation2 + $0x48] sm:$0xff]
        %v317 = vld [vmem:[#allocation2 + $0x50] sm:$0xff]
        %v318 = vld [vmem:[#allocation2 + $0x58] sm:$0xff]
        %v319 = vld [vmem:[#allocation2 + $0x60] sm:$0xff]
        %v320 = vld [vmem:[#allocation2 + $0x68] sm:$0xff]
        %v321 = vld [vmem:[#allocation2 + $0x70] sm:$0xff]
        %v322 = vld [vmem:[#allocation2 + $0x78] sm:$0xff]
        %v323 = vld [vmem:[#allocation2 + $0x80] sm:$0xff]
        %v324 = vld [vmem:[#allocation2 + $0x88] sm:$0xff]
        %v325 = vld [vmem:[#allocation2 + $0x90] sm:$0xff]
        %v326 = vld [vmem:[#allocation2 + $0x98] sm:$0xff]
        %v327 = vld [vmem:[#allocation2 + $0xa0] sm:$0xff]
        %v328 = vld [vmem:[#allocation2 + $0xa8] sm:$0xff]
        %v329 = vld [vmem:[#allocation2 + $0xb0] sm:$0xff]
        %v330 = vld [vmem:[#allocation2 + $0xb8] sm:$0xff]
        %v331 = vld [vmem:[#allocation2 + $0xc0] sm:$0xff]
        %v332 = vld [vmem:[#allocation2 + $0xc8] sm:$0xff]
        %v333 = vld [vmem:[#allocation2 + $0xd0] sm:$0xff]
        %v334 = vld [vmem:[#allocation2 + $0xd8] sm:$0xff]
        %v335 = vld [vmem:[#allocation2 + $0xe0] sm:$0xff]
        %v336 = vld [vmem:[#allocation2 + $0xe8] sm:$0xff]
        %v337 = vld [vmem:[#allocation2 + $0xf0] sm:$0xff]
        %v338 = vld [vmem:[#allocation2 + $0xf8] sm:$0xff]
        %v339 = vld [vmem:[#allocation2 + $0x100] sm:$0xff]
        %v340 = vld [vmem:[#allocation2 + $0x108] sm:$0xff]
        %v341 = vld [vmem:[#allocation2 + $0x110] sm:$0xff]
        %v342 = vld [vmem:[#allocation2 + $0x118] sm:$0xff]
        %v343 = vld [vmem:[#allocation2 + $0x120] sm:$0xff]
        %v344 = vld [vmem:[#allocation2 + $0x128] sm:$0xff]
        %v345 = vld [vmem:[#allocation2 + $0x130] sm:$0xff]
        %v346 = vld [vmem:[#allocation2 + $0x138] sm:$0xff]
        %v347 = vld [vmem:[#allocation2 + $0x140] sm:$0xff]
        %v348 = vld [vmem:[#allocation2 + $0x148] sm:$0xff]
        %v349 = vld [vmem:[#allocation2 + $0x150] sm:$0xff]
        %v350 = vld [vmem:[#allocation2 + $0x158] sm:$0xff]
        %v351 = vld [vmem:[#allocation2 + $0x160] sm:$0xff]
        %v352 = vld [vmem:[#allocation2 + $0x168] sm:$0xff]
        %v353 = vld [vmem:[#allocation2 + $0x170] sm:$0xff]
        %v354 = vld [vmem:[#allocation2 + $0x178] sm:$0xff]
        %v355 = vld [vmem:[#allocation2 + $0x180] sm:$0xff]
        %v356 = vld [vmem:[#allocation2 + $0x188] sm:$0xff]
        %v357 = vld [vmem:[#allocation2 + $0x190] sm:$0xff]
        %v358 = vld [vmem:[#allocation2 + $0x198] sm:$0xff]
        %v359 = vld [vmem:[#allocation2 + $0x1a0] sm:$0xff]
        %v360 = vld [vmem:[#allocation2 + $0x1a8] sm:$0xff]
        %v361 = vld [vmem:[#allocation2 + $0x1b0] sm:$0xff]
        %v362 = vld [vmem:[#allocation2 + $0x1b8] sm:$0xff]
        %v363 = vld [vmem:[#allocation2 + $0x1c0] sm:$0xff]
        %v364 = vld [vmem:[#allocation2 + $0x1c8] sm:$0xff]
        %v365 = vld [vmem:[#allocation2 + $0x1d0] sm:$0xff]
        %v366 = vld [vmem:[#allocation2 + $0x1d8] sm:$0xff]
        %v367 = vld [vmem:[#allocation2 + $0x1e0] sm:$0xff]
        %v368 = vld [vmem:[#allocation2 + $0x1e8] sm:$0xff]
        %v369 = vld [vmem:[#allocation2 + $0x1f0] sm:$0xff]
        %v370 = vld [vmem:[#allocation2 + $0x1f8] sm:$0xff]
        %v371 = vld [vmem:[%s198] sm:$0xff]
        %v372 = vld [vmem:[%s198 + $0x8] sm:$0xff]
        %v373 = vld [vmem:[%s198 + $0x10] sm:$0xff]
        %v374 = vld [vmem:[%s198 + $0x18] sm:$0xff]
        %v375 = vld [vmem:[%s198 + $0x20] sm:$0xff]
        %v376 = vld [vmem:[%s198 + $0x28] sm:$0xff]
        %v377 = vld [vmem:[%s198 + $0x30] sm:$0xff]
        %v378 = vld [vmem:[%s198 + $0x38] sm:$0xff]
        %v379 = vld [vmem:[%s198 + $0x40] sm:$0xff]
        %v380 = vld [vmem:[%s198 + $0x48] sm:$0xff]
        %v381 = vld [vmem:[%s198 + $0x50] sm:$0xff]
        %v382 = vld [vmem:[%s198 + $0x58] sm:$0xff]
        %v383 = vld [vmem:[%s198 + $0x60] sm:$0xff]
        %v384 = vld [vmem:[%s198 + $0x68] sm:$0xff]
        %v385 = vld [vmem:[%s198 + $0x70] sm:$0xff]
        %v386 = vld [vmem:[%s198 + $0x78] sm:$0xff]
        %v387 = vld [vmem:[%s198 + $0x80] sm:$0xff]
        %v388 = vld [vmem:[%s198 + $0x88] sm:$0xff]
        %v389 = vld [vmem:[%s198 + $0x90] sm:$0xff]
        %v390 = vld [vmem:[%s198 + $0x98] sm:$0xff]
        %v391 = vld [vmem:[%s198 + $0xa0] sm:$0xff]
        %v392 = vld [vmem:[%s198 + $0xa8] sm:$0xff]
        %v393 = vld [vmem:[%s198 + $0xb0] sm:$0xff]
        %v394 = vld [vmem:[%s198 + $0xb8] sm:$0xff]
        %v395 = vld [vmem:[%s198 + $0xc0] sm:$0xff]
        %v396 = vld [vmem:[%s198 + $0xc8] sm:$0xff]
        %v397 = vld [vmem:[%s198 + $0xd0] sm:$0xff]
        %v398 = vld [vmem:[%s198 + $0xd8] sm:$0xff]
        %v399 = vld [vmem:[%s198 + $0xe0] sm:$0xff]
        %v400 = vld [vmem:[%s198 + $0xe8] sm:$0xff]
        %v401 = vld [vmem:[%s198 + $0xf0] sm:$0xff]
        %v402 = vld [vmem:[%s198 + $0xf8] sm:$0xff]
        %v403 = vld [vmem:[%s198 + $0x100] sm:$0xff]
        %v404 = vld [vmem:[%s198 + $0x108] sm:$0xff]
        %v405 = vld [vmem:[%s198 + $0x110] sm:$0xff]
        %v406 = vld [vmem:[%s198 + $0x118] sm:$0xff]
        %v407 = vld [vmem:[%s198 + $0x120] sm:$0xff]
        %v408 = vld [vmem:[%s198 + $0x128] sm:$0xff]
        %v409 = vld [vmem:[%s198 + $0x130] sm:$0xff]
        %v410 = vld [vmem:[%s198 + $0x138] sm:$0xff]
        %v411 = vld [vmem:[%s198 + $0x140] sm:$0xff]
        %v412 = vld [vmem:[%s198 + $0x148] sm:$0xff]
        %v413 = vld [vmem:[%s198 + $0x150] sm:$0xff]
        %v414 = vld [vmem:[%s198 + $0x158] sm:$0xff]
        %v415 = vld [vmem:[%s198 + $0x160] sm:$0xff]
        %v416 = vld [vmem:[%s198 + $0x168] sm:$0xff]
        %v417 = vld [vmem:[%s198 + $0x170] sm:$0xff]
        %v418 = vld [vmem:[%s198 + $0x178] sm:$0xff]
        %v419 = vld [vmem:[%s198 + $0x180] sm:$0xff]
        %v420 = vld [vmem:[%s198 + $0x188] sm:$0xff]
        %v421 = vld [vmem:[%s198 + $0x190] sm:$0xff]
        %v422 = vld [vmem:[%s198 + $0x198] sm:$0xff]
        %v423 = vld [vmem:[%s198 + $0x1a0] sm:$0xff]
        %v424 = vld [vmem:[%s198 + $0x1a8] sm:$0xff]
        %v425 = vld [vmem:[%s198 + $0x1b0] sm:$0xff]
        %v426 = vld [vmem:[%s198 + $0x1b8] sm:$0xff]
        %v427 = vld [vmem:[%s198 + $0x1c0] sm:$0xff]
        %v428 = vld [vmem:[%s198 + $0x1c8] sm:$0xff]
        %v429 = vld [vmem:[%s198 + $0x1d0] sm:$0xff]
        %v430 = vld [vmem:[%s198 + $0x1d8] sm:$0xff]
        %v431 = vld [vmem:[%s198 + $0x1e0] sm:$0xff]
        %v432 = vld [vmem:[%s198 + $0x1e8] sm:$0xff]
        %v433 = vld [vmem:[%s198 + $0x1f0] sm:$0xff]
        %v434 = vld [vmem:[%s198 + $0x1f8] sm:$0xff]
        %v435 = vld [vmem:[%s207] sm:$0xff]
        %v436 = vld [vmem:[%s207 + $0x8] sm:$0xff]
        %v437 = vld [vmem:[%s207 + $0x10] sm:$0xff]
        %v438 = vld [vmem:[%s207 + $0x18] sm:$0xff]
        %v439 = vld [vmem:[%s207 + $0x20] sm:$0xff]
        %v440 = vld [vmem:[%s207 + $0x28] sm:$0xff]
        %v441 = vld [vmem:[%s207 + $0x30] sm:$0xff]
        %v442 = vld [vmem:[%s207 + $0x38] sm:$0xff]
        %v443 = vld [vmem:[%s207 + $0x40] sm:$0xff]
        %v444 = vld [vmem:[%s207 + $0x48] sm:$0xff]
        %v445 = vld [vmem:[%s207 + $0x50] sm:$0xff]
        %v446 = vld [vmem:[%s207 + $0x58] sm:$0xff]
        %v447 = vld [vmem:[%s207 + $0x60] sm:$0xff]
        %v448 = vld [vmem:[%s207 + $0x68] sm:$0xff]
        %v449 = vld [vmem:[%s207 + $0x70] sm:$0xff]
        %v450 = vld [vmem:[%s207 + $0x78] sm:$0xff]
        %v451 = vld [vmem:[%s207 + $0x80] sm:$0xff]
        %v452 = vld [vmem:[%s207 + $0x88] sm:$0xff]
        %v453 = vld [vmem:[%s207 + $0x90] sm:$0xff]
        %v454 = vld [vmem:[%s207 + $0x98] sm:$0xff]
        %v455 = vld [vmem:[%s207 + $0xa0] sm:$0xff]
        %v456 = vld [vmem:[%s207 + $0xa8] sm:$0xff]
        %v457 = vld [vmem:[%s207 + $0xb0] sm:$0xff]
        %v458 = vld [vmem:[%s207 + $0xb8] sm:$0xff]
        %v459 = vld [vmem:[%s207 + $0xc0] sm:$0xff]
        %v460 = vld [vmem:[%s207 + $0xc8] sm:$0xff]
        %v461 = vld [vmem:[%s207 + $0xd0] sm:$0xff]
        %v462 = vld [vmem:[%s207 + $0xd8] sm:$0xff]
        %v463 = vld [vmem:[%s207 + $0xe0] sm:$0xff]
        %v464 = vld [vmem:[%s207 + $0xe8] sm:$0xff]
        %v465 = vld [vmem:[%s207 + $0xf0] sm:$0xff]
        %v466 = vld [vmem:[%s207 + $0xf8] sm:$0xff]
        %v467 = vld [vmem:[%s207 + $0x100] sm:$0xff]
        %v468 = vld [vmem:[%s207 + $0x108] sm:$0xff]
        %v469 = vld [vmem:[%s207 + $0x110] sm:$0xff]
        %v470 = vld [vmem:[%s207 + $0x118] sm:$0xff]
        %v471 = vld [vmem:[%s207 + $0x120] sm:$0xff]
        %v472 = vld [vmem:[%s207 + $0x128] sm:$0xff]
        %v473 = vld [vmem:[%s207 + $0x130] sm:$0xff]
        %v474 = vld [vmem:[%s207 + $0x138] sm:$0xff]
        %v475 = vld [vmem:[%s207 + $0x140] sm:$0xff]
        %v476 = vld [vmem:[%s207 + $0x148] sm:$0xff]
        %v477 = vld [vmem:[%s207 + $0x150] sm:$0xff]
        %v478 = vld [vmem:[%s207 + $0x158] sm:$0xff]
        %v479 = vld [vmem:[%s207 + $0x160] sm:$0xff]
        %v480 = vld [vmem:[%s207 + $0x168] sm:$0xff]
        %v481 = vld [vmem:[%s207 + $0x170] sm:$0xff]
        %v482 = vld [vmem:[%s207 + $0x178] sm:$0xff]
        %v483 = vld [vmem:[%s207 + $0x180] sm:$0xff]
        %v484 = vld [vmem:[%s207 + $0x188] sm:$0xff]
        %v485 = vld [vmem:[%s207 + $0x190] sm:$0xff]
        %v486 = vld [vmem:[%s207 + $0x198] sm:$0xff]
        %v487 = vld [vmem:[%s207 + $0x1a0] sm:$0xff]
        %v488 = vld [vmem:[%s207 + $0x1a8] sm:$0xff]
        %v489 = vld [vmem:[%s207 + $0x1b0] sm:$0xff]
        %v490 = vld [vmem:[%s207 + $0x1b8] sm:$0xff]
        %v491 = vld [vmem:[%s207 + $0x1c0] sm:$0xff]
        %v492 = vld [vmem:[%s207 + $0x1c8] sm:$0xff]
        %v493 = vld [vmem:[%s207 + $0x1d0] sm:$0xff]
        %v494 = vld [vmem:[%s207 + $0x1d8] sm:$0xff]
        %v495 = vld [vmem:[%s207 + $0x1e0] sm:$0xff]
        %v496 = vld [vmem:[%s207 + $0x1e8] sm:$0xff]
        %v497 = vld [vmem:[%s207 + $0x1f0] sm:$0xff]
        %v498 = vld [vmem:[%s207 + $0x1f8] sm:$0xff]
        %v563 = vunpack.c.l.b16 %v371
        %v564 = vunpack.c.h.b16 %v371
        %v565 = vunpack.c.l.b16 %v372
        %v566 = vunpack.c.h.b16 %v372
        %v567 = vunpack.c.l.b16 %v373
        %v568 = vunpack.c.h.b16 %v373
        %v569 = vunpack.c.l.b16 %v374
        %v570 = vunpack.c.h.b16 %v374
        %v571 = vunpack.c.l.b16 %v375
        %v572 = vunpack.c.h.b16 %v375
        %v573 = vunpack.c.l.b16 %v376
        %v574 = vunpack.c.h.b16 %v376
        %v575 = vunpack.c.l.b16 %v377
        %v576 = vunpack.c.h.b16 %v377
        %v577 = vunpack.c.l.b16 %v378
        %v578 = vunpack.c.h.b16 %v378
        %v579 = vunpack.c.l.b16 %v379
        %v580 = vunpack.c.h.b16 %v379
        %v581 = vunpack.c.l.b16 %v380
        %v582 = vunpack.c.h.b16 %v380
        %v583 = vunpack.c.l.b16 %v381
        %v584 = vunpack.c.h.b16 %v381
        %v585 = vunpack.c.l.b16 %v382
        %v586 = vunpack.c.h.b16 %v382
        %v587 = vunpack.c.l.b16 %v383
        %v588 = vunpack.c.h.b16 %v383
        %v589 = vunpack.c.l.b16 %v384
        %v590 = vunpack.c.h.b16 %v384
        %v591 = vunpack.c.l.b16 %v385
        %v592 = vunpack.c.h.b16 %v385
        %v593 = vunpack.c.l.b16 %v386
        %v594 = vunpack.c.h.b16 %v386
        %v595 = vunpack.c.l.b16 %v387
        %v596 = vunpack.c.h.b16 %v387
        %v597 = vunpack.c.l.b16 %v388
        %v598 = vunpack.c.h.b16 %v388
        %v599 = vunpack.c.l.b16 %v389
        %v600 = vunpack.c.h.b16 %v389
        %v601 = vunpack.c.l.b16 %v390
        %v602 = vunpack.c.h.b16 %v390
        %v603 = vunpack.c.l.b16 %v391
        %v604 = vunpack.c.h.b16 %v391
        %v605 = vunpack.c.l.b16 %v392
        %v606 = vunpack.c.h.b16 %v392
        %v607 = vunpack.c.l.b16 %v393
        %v608 = vunpack.c.h.b16 %v393
        %v609 = vunpack.c.l.b16 %v394
        %v610 = vunpack.c.h.b16 %v394
        %v611 = vunpack.c.l.b16 %v395
        %v612 = vunpack.c.h.b16 %v395
        %v613 = vunpack.c.l.b16 %v396
        %v614 = vunpack.c.h.b16 %v396
        %v615 = vunpack.c.l.b16 %v397
        %v616 = vunpack.c.h.b16 %v397
        %v617 = vunpack.c.l.b16 %v398
        %v618 = vunpack.c.h.b16 %v398
        %v619 = vunpack.c.l.b16 %v399
        %v620 = vunpack.c.h.b16 %v399
        %v621 = vunpack.c.l.b16 %v400
        %v622 = vunpack.c.h.b16 %v400
        %v623 = vunpack.c.l.b16 %v401
        %v624 = vunpack.c.h.b16 %v401
        %v625 = vunpack.c.l.b16 %v402
        %v626 = vunpack.c.h.b16 %v402
        %v627 = vunpack.c.l.b16 %v403
        %v628 = vunpack.c.h.b16 %v403
        %v629 = vunpack.c.l.b16 %v404
        %v630 = vunpack.c.h.b16 %v404
        %v631 = vunpack.c.l.b16 %v405
        %v632 = vunpack.c.h.b16 %v405
        %v633 = vunpack.c.l.b16 %v406
        %v634 = vunpack.c.h.b16 %v406
        %v635 = vunpack.c.l.b16 %v407
        %v636 = vunpack.c.h.b16 %v407
        %v637 = vunpack.c.l.b16 %v408
        %v638 = vunpack.c.h.b16 %v408
        %v639 = vunpack.c.l.b16 %v409
        %v640 = vunpack.c.h.b16 %v409
        %v641 = vunpack.c.l.b16 %v410
        %v642 = vunpack.c.h.b16 %v410
        %v643 = vunpack.c.l.b16 %v411
        %v644 = vunpack.c.h.b16 %v411
        %v645 = vunpack.c.l.b16 %v412
        %v646 = vunpack.c.h.b16 %v412
        %v647 = vunpack.c.l.b16 %v413
        %v648 = vunpack.c.h.b16 %v413
        %v649 = vunpack.c.l.b16 %v414
        %v650 = vunpack.c.h.b16 %v414
        %v651 = vunpack.c.l.b16 %v415
        %v652 = vunpack.c.h.b16 %v415
        %v653 = vunpack.c.l.b16 %v416
        %v654 = vunpack.c.h.b16 %v416
        %v655 = vunpack.c.l.b16 %v417
        %v656 = vunpack.c.h.b16 %v417
        %v657 = vunpack.c.l.b16 %v418
        %v658 = vunpack.c.h.b16 %v418
        %v659 = vunpack.c.l.b16 %v419
        %v660 = vunpack.c.h.b16 %v419
        %v661 = vunpack.c.l.b16 %v420
        %v662 = vunpack.c.h.b16 %v420
        %v663 = vunpack.c.l.b16 %v421
        %v664 = vunpack.c.h.b16 %v421
        %v665 = vunpack.c.l.b16 %v422
        %v666 = vunpack.c.h.b16 %v422
        %v667 = vunpack.c.l.b16 %v423
        %v668 = vunpack.c.h.b16 %v423
        %v669 = vunpack.c.l.b16 %v424
        %v670 = vunpack.c.h.b16 %v424
        %v671 = vunpack.c.l.b16 %v425
        %v672 = vunpack.c.h.b16 %v425
        %v673 = vunpack.c.l.b16 %v426
        %v674 = vunpack.c.h.b16 %v426
        %v675 = vunpack.c.l.b16 %v427
        %v676 = vunpack.c.h.b16 %v427
        %v677 = vunpack.c.l.b16 %v428
        %v678 = vunpack.c.h.b16 %v428
        %v679 = vunpack.c.l.b16 %v429
        %v680 = vunpack.c.h.b16 %v429
        %v681 = vunpack.c.l.b16 %v430
        %v682 = vunpack.c.h.b16 %v430
        %v683 = vunpack.c.l.b16 %v431
        %v684 = vunpack.c.h.b16 %v431
        %v685 = vunpack.c.l.b16 %v432
        %v686 = vunpack.c.h.b16 %v432
        %v687 = vunpack.c.l.b16 %v433
        %v688 = vunpack.c.h.b16 %v433
        %v689 = vunpack.c.l.b16 %v434
        %v690 = vunpack.c.h.b16 %v434
        %v691 = vpack.c.b16 %v567, %v563
        %v692 = vpack.c.b16 %v568, %v564
        %v693 = vpack.c.b16 %v569, %v565
        %v694 = vpack.c.b16 %v570, %v566
        %v695 = vpack.c.b16 %v575, %v571
        %v696 = vpack.c.b16 %v576, %v572
        %v697 = vpack.c.b16 %v577, %v573
        %v698 = vpack.c.b16 %v578, %v574
        %v699 = vpack.c.b16 %v583, %v579
        %v700 = vpack.c.b16 %v584, %v580
        %v701 = vpack.c.b16 %v585, %v581
        %v702 = vpack.c.b16 %v586, %v582
        %v703 = vpack.c.b16 %v591, %v587
        %v704 = vpack.c.b16 %v592, %v588
        %v705 = vpack.c.b16 %v593, %v589
        %v706 = vpack.c.b16 %v594, %v590
        %v707 = vpack.c.b16 %v599, %v595
        %v708 = vpack.c.b16 %v600, %v596
        %v709 = vpack.c.b16 %v601, %v597
        %v710 = vpack.c.b16 %v602, %v598
        %v711 = vpack.c.b16 %v607, %v603
        %v712 = vpack.c.b16 %v608, %v604
        %v713 = vpack.c.b16 %v609, %v605
        %v714 = vpack.c.b16 %v610, %v606
        %v715 = vpack.c.b16 %v615, %v611
        %v716 = vpack.c.b16 %v616, %v612
        %v717 = vpack.c.b16 %v617, %v613
        %v718 = vpack.c.b16 %v618, %v614
        %v719 = vpack.c.b16 %v623, %v619
        %v720 = vpack.c.b16 %v624, %v620
        %v721 = vpack.c.b16 %v625, %v621
        %v722 = vpack.c.b16 %v626, %v622
        %v723 = vpack.c.b16 %v631, %v627
        %v724 = vpack.c.b16 %v632, %v628
        %v725 = vpack.c.b16 %v633, %v629
        %v726 = vpack.c.b16 %v634, %v630
        %v727 = vpack.c.b16 %v639, %v635
        %v728 = vpack.c.b16 %v640, %v636
        %v729 = vpack.c.b16 %v641, %v637
        %v730 = vpack.c.b16 %v642, %v638
        %v731 = vpack.c.b16 %v647, %v643
        %v732 = vpack.c.b16 %v648, %v644
        %v733 = vpack.c.b16 %v649, %v645
        %v734 = vpack.c.b16 %v650, %v646
        %v735 = vpack.c.b16 %v655, %v651
        %v736 = vpack.c.b16 %v656, %v652
        %v737 = vpack.c.b16 %v657, %v653
        %v738 = vpack.c.b16 %v658, %v654
        %v739 = vpack.c.b16 %v663, %v659
        %v740 = vpack.c.b16 %v664, %v660
        %v741 = vpack.c.b16 %v665, %v661
        %v742 = vpack.c.b16 %v666, %v662
        %v743 = vpack.c.b16 %v671, %v667
        %v744 = vpack.c.b16 %v672, %v668
        %v745 = vpack.c.b16 %v673, %v669
        %v746 = vpack.c.b16 %v674, %v670
        %v747 = vpack.c.b16 %v679, %v675
        %v748 = vpack.c.b16 %v680, %v676
        %v749 = vpack.c.b16 %v681, %v677
        %v750 = vpack.c.b16 %v682, %v678
        %v751 = vpack.c.b16 %v687, %v683
        %v752 = vpack.c.b16 %v688, %v684
        %v753 = vpack.c.b16 %v689, %v685
        %v754 = vpack.c.b16 %v690, %v686
        %v883 = vunpack.c.l.b16 %v435
        %v884 = vunpack.c.h.b16 %v435
        %v885 = vunpack.c.l.b16 %v436
        %v886 = vunpack.c.h.b16 %v436
        %v887 = vunpack.c.l.b16 %v437
        %v888 = vunpack.c.h.b16 %v437
        %v889 = vunpack.c.l.b16 %v438
        %v890 = vunpack.c.h.b16 %v438
        %v891 = vunpack.c.l.b16 %v439
        %v892 = vunpack.c.h.b16 %v439
        %v893 = vunpack.c.l.b16 %v440
        %v894 = vunpack.c.h.b16 %v440
        %v895 = vunpack.c.l.b16 %v441
        %v896 = vunpack.c.h.b16 %v441
        %v897 = vunpack.c.l.b16 %v442
        %v898 = vunpack.c.h.b16 %v442
        %v899 = vunpack.c.l.b16 %v443
        %v900 = vunpack.c.h.b16 %v443
        %v901 = vunpack.c.l.b16 %v444
        %v902 = vunpack.c.h.b16 %v444
        %v903 = vunpack.c.l.b16 %v445
        %v904 = vunpack.c.h.b16 %v445
        %v905 = vunpack.c.l.b16 %v446
        %v906 = vunpack.c.h.b16 %v446
        %v907 = vunpack.c.l.b16 %v447
        %v908 = vunpack.c.h.b16 %v447
        %v909 = vunpack.c.l.b16 %v448
        %v910 = vunpack.c.h.b16 %v448
        %v911 = vunpack.c.l.b16 %v449
        %v912 = vunpack.c.h.b16 %v449
        %v913 = vunpack.c.l.b16 %v450
        %v914 = vunpack.c.h.b16 %v450
        %v915 = vunpack.c.l.b16 %v451
        %v916 = vunpack.c.h.b16 %v451
        %v917 = vunpack.c.l.b16 %v452
        %v918 = vunpack.c.h.b16 %v452
        %v919 = vunpack.c.l.b16 %v453
        %v920 = vunpack.c.h.b16 %v453
        %v921 = vunpack.c.l.b16 %v454
        %v922 = vunpack.c.h.b16 %v454
        %v923 = vunpack.c.l.b16 %v455
        %v924 = vunpack.c.h.b16 %v455
        %v925 = vunpack.c.l.b16 %v456
        %v926 = vunpack.c.h.b16 %v456
        %v927 = vunpack.c.l.b16 %v457
        %v928 = vunpack.c.h.b16 %v457
        %v929 = vunpack.c.l.b16 %v458
        %v930 = vunpack.c.h.b16 %v458
        %v931 = vunpack.c.l.b16 %v459
        %v932 = vunpack.c.h.b16 %v459
        %v933 = vunpack.c.l.b16 %v460
        %v934 = vunpack.c.h.b16 %v460
        %v935 = vunpack.c.l.b16 %v461
        %v936 = vunpack.c.h.b16 %v461
        %v937 = vunpack.c.l.b16 %v462
        %v938 = vunpack.c.h.b16 %v462
        %v939 = vunpack.c.l.b16 %v463
        %v940 = vunpack.c.h.b16 %v463
        %v941 = vunpack.c.l.b16 %v464
        %v942 = vunpack.c.h.b16 %v464
        %v943 = vunpack.c.l.b16 %v465
        %v944 = vunpack.c.h.b16 %v465
        %v945 = vunpack.c.l.b16 %v466
        %v946 = vunpack.c.h.b16 %v466
        %v947 = vunpack.c.l.b16 %v467
        %v948 = vunpack.c.h.b16 %v467
        %v949 = vunpack.c.l.b16 %v468
        %v950 = vunpack.c.h.b16 %v468
        %v951 = vunpack.c.l.b16 %v469
        %v952 = vunpack.c.h.b16 %v469
        %v953 = vunpack.c.l.b16 %v470
        %v954 = vunpack.c.h.b16 %v470
        %v955 = vunpack.c.l.b16 %v471
        %v956 = vunpack.c.h.b16 %v471
        %v957 = vunpack.c.l.b16 %v472
        %v958 = vunpack.c.h.b16 %v472
        %v959 = vunpack.c.l.b16 %v473
        %v960 = vunpack.c.h.b16 %v473
        %v961 = vunpack.c.l.b16 %v474
        %v962 = vunpack.c.h.b16 %v474
        %v963 = vunpack.c.l.b16 %v475
        %v964 = vunpack.c.h.b16 %v475
        %v965 = vunpack.c.l.b16 %v476
        %v966 = vunpack.c.h.b16 %v476
        %v967 = vunpack.c.l.b16 %v477
        %v968 = vunpack.c.h.b16 %v477
        %v969 = vunpack.c.l.b16 %v478
        %v970 = vunpack.c.h.b16 %v478
        %v971 = vunpack.c.l.b16 %v479
        %v972 = vunpack.c.h.b16 %v479
        %v973 = vunpack.c.l.b16 %v480
        %v974 = vunpack.c.h.b16 %v480
        %v975 = vunpack.c.l.b16 %v481
        %v976 = vunpack.c.h.b16 %v481
        %v977 = vunpack.c.l.b16 %v482
        %v978 = vunpack.c.h.b16 %v482
        %v979 = vunpack.c.l.b16 %v483
        %v980 = vunpack.c.h.b16 %v483
        %v981 = vunpack.c.l.b16 %v484
        %v982 = vunpack.c.h.b16 %v484
        %v983 = vunpack.c.l.b16 %v485
        %v984 = vunpack.c.h.b16 %v485
        %v985 = vunpack.c.l.b16 %v486
        %v986 = vunpack.c.h.b16 %v486
        %v987 = vunpack.c.l.b16 %v487
        %v988 = vunpack.c.h.b16 %v487
        %v989 = vunpack.c.l.b16 %v488
        %v990 = vunpack.c.h.b16 %v488
        %v991 = vunpack.c.l.b16 %v489
        %v992 = vunpack.c.h.b16 %v489
        %v993 = vunpack.c.l.b16 %v490
        %v994 = vunpack.c.h.b16 %v490
        %v995 = vunpack.c.l.b16 %v491
        %v996 = vunpack.c.h.b16 %v491
        %v997 = vunpack.c.l.b16 %v492
        %v998 = vunpack.c.h.b16 %v492
        %v999 = vunpack.c.l.b16 %v493
        %v1000 = vunpack.c.h.b16 %v493
        %v1001 = vunpack.c.l.b16 %v494
        %v1002 = vunpack.c.h.b16 %v494
        %v1003 = vunpack.c.l.b16 %v495
        %v1004 = vunpack.c.h.b16 %v495
        %v1005 = vunpack.c.l.b16 %v496
        %v1006 = vunpack.c.h.b16 %v496
        %v1007 = vunpack.c.l.b16 %v497
        %v1008 = vunpack.c.h.b16 %v497
        %v1009 = vunpack.c.l.b16 %v498
        %v1010 = vunpack.c.h.b16 %v498
        %v1011 = vpack.c.b16 %v887, %v883
        %v1012 = vpack.c.b16 %v888, %v884
        %v1013 = vpack.c.b16 %v889, %v885
        %v1014 = vpack.c.b16 %v890, %v886
        %v1015 = vpack.c.b16 %v895, %v891
        %v1016 = vpack.c.b16 %v896, %v892
        %v1017 = vpack.c.b16 %v897, %v893
        %v1018 = vpack.c.b16 %v898, %v894
        %v1019 = vpack.c.b16 %v903, %v899
        %v1020 = vpack.c.b16 %v904, %v900
        %v1021 = vpack.c.b16 %v905, %v901
        %v1022 = vpack.c.b16 %v906, %v902
        %v1023 = vpack.c.b16 %v911, %v907
        %v1024 = vpack.c.b16 %v912, %v908
        %v1025 = vpack.c.b16 %v913, %v909
        %v1026 = vpack.c.b16 %v914, %v910
        %v1027 = vpack.c.b16 %v919, %v915
        %v1028 = vpack.c.b16 %v920, %v916
        %v1029 = vpack.c.b16 %v921, %v917
        %v1030 = vpack.c.b16 %v922, %v918
        %v1031 = vpack.c.b16 %v927, %v923
        %v1032 = vpack.c.b16 %v928, %v924
        %v1033 = vpack.c.b16 %v929, %v925
        %v1034 = vpack.c.b16 %v930, %v926
        %v1035 = vpack.c.b16 %v935, %v931
        %v1036 = vpack.c.b16 %v936, %v932
        %v1037 = vpack.c.b16 %v937, %v933
        %v1038 = vpack.c.b16 %v938, %v934
        %v1039 = vpack.c.b16 %v943, %v939
        %v1040 = vpack.c.b16 %v944, %v940
        %v1041 = vpack.c.b16 %v945, %v941
        %v1042 = vpack.c.b16 %v946, %v942
        %v1043 = vpack.c.b16 %v951, %v947
        %v1044 = vpack.c.b16 %v952, %v948
        %v1045 = vpack.c.b16 %v953, %v949
        %v1046 = vpack.c.b16 %v954, %v950
        %v1047 = vpack.c.b16 %v959, %v955
        %v1048 = vpack.c.b16 %v960, %v956
        %v1049 = vpack.c.b16 %v961, %v957
        %v1050 = vpack.c.b16 %v962, %v958
        %v1051 = vpack.c.b16 %v967, %v963
        %v1052 = vpack.c.b16 %v968, %v964
        %v1053 = vpack.c.b16 %v969, %v965
        %v1054 = vpack.c.b16 %v970, %v966
        %v1055 = vpack.c.b16 %v975, %v971
        %v1056 = vpack.c.b16 %v976, %v972
        %v1057 = vpack.c.b16 %v977, %v973
        %v1058 = vpack.c.b16 %v978, %v974
        %v1059 = vpack.c.b16 %v983, %v979
        %v1060 = vpack.c.b16 %v984, %v980
        %v1061 = vpack.c.b16 %v985, %v981
        %v1062 = vpack.c.b16 %v986, %v982
        %v1063 = vpack.c.b16 %v991, %v987
        %v1064 = vpack.c.b16 %v992, %v988
        %v1065 = vpack.c.b16 %v993, %v989
        %v1066 = vpack.c.b16 %v994, %v990
        %v1067 = vpack.c.b16 %v999, %v995
        %v1068 = vpack.c.b16 %v1000, %v996
        %v1069 = vpack.c.b16 %v1001, %v997
        %v1070 = vpack.c.b16 %v1002, %v998
        %v1071 = vpack.c.b16 %v1007, %v1003
        %v1072 = vpack.c.b16 %v1008, %v1004
        %v1073 = vpack.c.b16 %v1009, %v1005
        %v1074 = vpack.c.b16 %v1010, %v1006
        %1139 = vmatprep.subr.bf16.mxu0 %v1012
        %1140 = vmatpush1.bf16.xpose.msra.mxu0 %v1011
        %1141 = vmatprep.subr.bf16.mxu0 %v1016
        %1142 = vmatpush1.bf16.xpose.msra.mxu0 %v1015
        %1143 = vmatprep.subr.bf16.mxu0 %v1020
        %1144 = vmatpush1.bf16.xpose.msra.mxu0 %v1019
        %1145 = vmatprep.subr.bf16.mxu0 %v1024
        %1146 = vmatpush1.bf16.xpose.msra.mxu0 %v1023
        %1147 = vmatprep.subr.bf16.mxu0 %v1028
        %1148 = vmatpush1.bf16.xpose.msra.mxu0 %v1027
        %1149 = vmatprep.subr.bf16.mxu0 %v1032
        %1150 = vmatpush1.bf16.xpose.msra.mxu0 %v1031
        %1151 = vmatprep.subr.bf16.mxu0 %v1036
        %1152 = vmatpush1.bf16.xpose.msra.mxu0 %v1035
        %1153 = vmatprep.subr.bf16.mxu0 %v1040
        %1154 = vmatpush1.bf16.xpose.msra.mxu0 %v1039
        %1155 = vmatprep.subr.bf16.mxu0 %v1044
        %1156 = vmatpush1.bf16.xpose.msra.mxu0 %v1043
        %1157 = vmatprep.subr.bf16.mxu0 %v1048
        %1158 = vmatpush1.bf16.xpose.msra.mxu0 %v1047
        %1159 = vmatprep.subr.bf16.mxu0 %v1052
        %1160 = vmatpush1.bf16.xpose.msra.mxu0 %v1051
        %1161 = vmatprep.subr.bf16.mxu0 %v1056
        %1162 = vmatpush1.bf16.xpose.msra.mxu0 %v1055
        %1163 = vmatprep.subr.bf16.mxu0 %v1060
        %1164 = vmatpush1.bf16.xpose.msra.mxu0 %v1059
        %1165 = vmatprep.subr.bf16.mxu0 %v1064
        %1166 = vmatpush1.bf16.xpose.msra.mxu0 %v1063
        %1167 = vmatprep.subr.bf16.mxu0 %v1068
        %1168 = vmatpush1.bf16.xpose.msra.mxu0 %v1067
        %1169 = vmatprep.subr.bf16.mxu0 %v1072
        %1170 = vmatpush1.bf16.xpose.msra.mxu0 %v1071
        %1171 = vmatprep.mubr.bf16.mxu0 %v692
        %1172 = vmatmul.mubr.bf16.gmra.mrb[0].mxu0 %v691
        %v1173 = vpop.f32.mrb[0].mxu0
        %v1174 = vadd.f32 0.0, %v1173
        %v1175 = vpop.f32.mrb[0].mxu0
        %v1176 = vadd.f32 0.0, %v1175
        %v1177 = vpop.f32.mrb[0].mxu0
        %v1178 = vadd.f32 0.0, %v1177
        %v1179 = vpop.f32.mrb[0].mxu0
        %v1180 = vadd.f32 0.0, %v1179
        %1181 = vmatprep.mubr.bf16.mxu0 %v696
        %1182 = vmatmul.mubr.bf16.gmra.mrb[0].mxu0 %v695
        %v1183 = vpop.f32.mrb[0].mxu0
        %v1184 = vadd.f32 0.0, %v1183
        %v1185 = vpop.f32.mrb[0].mxu0
        %v1186 = vadd.f32 0.0, %v1185
        %v1187 = vpop.f32.mrb[0].mxu0
        %v1188 = vadd.f32 0.0, %v1187
        %v1189 = vpop.f32.mrb[0].mxu0
        %v1190 = vadd.f32 0.0, %v1189
        %1191 = vmatprep.mubr.bf16.mxu0 %v700
        %1192 = vmatmul.mubr.bf16.gmra.mrb[0].mxu0 %v699
        %v1193 = vpop.f32.mrb[0].mxu0
        %v1194 = vadd.f32 0.0, %v1193
        %v1195 = vpop.f32.mrb[0].mxu0
        %v1196 = vadd.f32 0.0, %v1195
        %v1197 = vpop.f32.mrb[0].mxu0
        %v1198 = vadd.f32 0.0, %v1197
        %v1199 = vpop.f32.mrb[0].mxu0
        %v1200 = vadd.f32 0.0, %v1199
        %1201 = vmatprep.mubr.bf16.mxu0 %v704
        %1202 = vmatmul.mubr.bf16.gmra.mrb[0].mxu0 %v703
        %v1203 = vpop.f32.mrb[0].mxu0
        %v1204 = vadd.f32 0.0, %v1203
        %v1205 = vpop.f32.mrb[0].mxu0
        %v1206 = vadd.f32 0.0, %v1205
        %v1207 = vpop.f32.mrb[0].mxu0
        %v1208 = vadd.f32 0.0, %v1207
        %v1209 = vpop.f32.mrb[0].mxu0
        %v1210 = vadd.f32 0.0, %v1209
        %1211 = vmatprep.mubr.bf16.mxu0 %v708
        %1212 = vmatmul.mubr.bf16.gmra.mrb[0].mxu0 %v707
        %v1213 = vpop.f32.mrb[0].mxu0
        %v1214 = vadd.f32 0.0, %v1213
        %v1215 = vpop.f32.mrb[0].mxu0
        %v1216 = vadd.f32 0.0, %v1215
        %v1217 = vpop.f32.mrb[0].mxu0
        %v1218 = vadd.f32 0.0, %v1217
        %v1219 = vpop.f32.mrb[0].mxu0
        %v1220 = vadd.f32 0.0, %v1219
        %1221 = vmatprep.mubr.bf16.mxu0 %v712
        %1222 = vmatmul.mubr.bf16.gmra.mrb[0].mxu0 %v711
        %v1223 = vpop.f32.mrb[0].mxu0
        %v1224 = vadd.f32 0.0, %v1223
        %v1225 = vpop.f32.mrb[0].mxu0
        %v1226 = vadd.f32 0.0, %v1225
        %v1227 = vpop.f32.mrb[0].mxu0
        %v1228 = vadd.f32 0.0, %v1227
        %v1229 = vpop.f32.mrb[0].mxu0
        %v1230 = vadd.f32 0.0, %v1229
        %1231 = vmatprep.mubr.bf16.mxu0 %v716
        %1232 = vmatmul.mubr.bf16.gmra.mrb[0].mxu0 %v715
        %v1233 = vpop.f32.mrb[0].mxu0
        %v1234 = vadd.f32 0.0, %v1233
        %v1235 = vpop.f32.mrb[0].mxu0
        %v1236 = vadd.f32 0.0, %v1235
        %v1237 = vpop.f32.mrb[0].mxu0
        %v1238 = vadd.f32 0.0, %v1237
        %v1239 = vpop.f32.mrb[0].mxu0
        %v1240 = vadd.f32 0.0, %v1239
        %1241 = vmatprep.mubr.bf16.mxu0 %v720
        %1242 = vmatmul.mubr.bf16.gmra.mrb[0].mxu0 %v719
        %v1243 = vpop.f32.mrb[0].mxu0
        %v1244 = vadd.f32 0.0, %v1243
        %v1245 = vpop.f32.mrb[0].mxu0
        %v1246 = vadd.f32 0.0, %v1245
        %v1247 = vpop.f32.mrb[0].mxu0
        %v1248 = vadd.f32 0.0, %v1247
        %v1249 = vpop.f32.mrb[0].mxu0
        %v1250 = vadd.f32 0.0, %v1249
        %1251 = vmatprep.mubr.bf16.mxu0 %v724
        %1252 = vmatmul.mubr.bf16.gmra.mrb[0].mxu0 %v723
        %v1253 = vpop.f32.mrb[0].mxu0
        %v1254 = vadd.f32 0.0, %v1253
        %v1255 = vpop.f32.mrb[0].mxu0
        %v1256 = vadd.f32 0.0, %v1255
        %v1257 = vpop.f32.mrb[0].mxu0
        %v1258 = vadd.f32 0.0, %v1257
        %v1259 = vpop.f32.mrb[0].mxu0
        %v1260 = vadd.f32 0.0, %v1259
        %1261 = vmatprep.mubr.bf16.mxu0 %v728
        %1262 = vmatmul.mubr.bf16.gmra.mrb[0].mxu0 %v727
        %v1263 = vpop.f32.mrb[0].mxu0
        %v1264 = vadd.f32 0.0, %v1263
        %v1265 = vpop.f32.mrb[0].mxu0
        %v1266 = vadd.f32 0.0, %v1265
        %v1267 = vpop.f32.mrb[0].mxu0
        %v1268 = vadd.f32 0.0, %v1267
        %v1269 = vpop.f32.mrb[0].mxu0
        %v1270 = vadd.f32 0.0, %v1269
        %1271 = vmatprep.mubr.bf16.mxu0 %v732
        %1272 = vmatmul.mubr.bf16.gmra.mrb[0].mxu0 %v731
        %v1273 = vpop.f32.mrb[0].mxu0
        %v1274 = vadd.f32 0.0, %v1273
        %v1275 = vpop.f32.mrb[0].mxu0
        %v1276 = vadd.f32 0.0, %v1275
        %v1277 = vpop.f32.mrb[0].mxu0
        %v1278 = vadd.f32 0.0, %v1277
        %v1279 = vpop.f32.mrb[0].mxu0
        %v1280 = vadd.f32 0.0, %v1279
        %1281 = vmatprep.mubr.bf16.mxu0 %v736
        %1282 = vmatmul.mubr.bf16.gmra.mrb[0].mxu0 %v735
        %v1283 = vpop.f32.mrb[0].mxu0
        %v1284 = vadd.f32 0.0, %v1283
        %v1285 = vpop.f32.mrb[0].mxu0
        %v1286 = vadd.f32 0.0, %v1285
        %v1287 = vpop.f32.mrb[0].mxu0
        %v1288 = vadd.f32 0.0, %v1287
        %v1289 = vpop.f32.mrb[0].mxu0
        %v1290 = vadd.f32 0.0, %v1289
        %1291 = vmatprep.mubr.bf16.mxu0 %v740
        %1292 = vmatmul.mubr.bf16.gmra.mrb[0].mxu0 %v739
        %v1293 = vpop.f32.mrb[0].mxu0
        %v1294 = vadd.f32 0.0, %v1293
        %v1295 = vpop.f32.mrb[0].mxu0
        %v1296 = vadd.f32 0.0, %v1295
        %v1297 = vpop.f32.mrb[0].mxu0
        %v1298 = vadd.f32 0.0, %v1297
        %v1299 = vpop.f32.mrb[0].mxu0
        %v1300 = vadd.f32 0.0, %v1299
        %1301 = vmatprep.mubr.bf16.mxu0 %v744
        %1302 = vmatmul.mubr.bf16.gmra.mrb[0].mxu0 %v743
        %v1303 = vpop.f32.mrb[0].mxu0
        %v1304 = vadd.f32 0.0, %v1303
        %v1305 = vpop.f32.mrb[0].mxu0
        %v1306 = vadd.f32 0.0, %v1305
        %v1307 = vpop.f32.mrb[0].mxu0
        %v1308 = vadd.f32 0.0, %v1307
        %v1309 = vpop.f32.mrb[0].mxu0
        %v1310 = vadd.f32 0.0, %v1309
        %1311 = vmatprep.mubr.bf16.mxu0 %v748
        %1312 = vmatmul.mubr.bf16.gmra.mrb[0].mxu0 %v747
        %v1313 = vpop.f32.mrb[0].mxu0
        %v1314 = vadd.f32 0.0, %v1313
        %v1315 = vpop.f32.mrb[0].mxu0
        %v1316 = vadd.f32 0.0, %v1315
        %v1317 = vpop.f32.mrb[0].mxu0
        %v1318 = vadd.f32 0.0, %v1317
        %v1319 = vpop.f32.mrb[0].mxu0
        %v1320 = vadd.f32 0.0, %v1319
        %1321 = vmatprep.mubr.bf16.mxu0 %v752
        %1322 = vmatmul.mubr.bf16.gmra.mrb[0].mxu0 %v751
        %v1323 = vpop.f32.mrb[0].mxu0
        %v1324 = vadd.f32 0.0, %v1323
        %v1325 = vpop.f32.mrb[0].mxu0
        %v1326 = vadd.f32 0.0, %v1325
        %v1327 = vpop.f32.mrb[0].mxu0
        %v1328 = vadd.f32 0.0, %v1327
        %v1329 = vpop.f32.mrb[0].mxu0
        %v1330 = vadd.f32 0.0, %v1329
        %1331 = vdwg.mxu0
        %1332 = vmatprep.subr.bf16.mxu0 %v1014
        %1333 = vmatpush1.bf16.xpose.msra.mxu0 %v1013
        %1334 = vmatprep.subr.bf16.mxu0 %v1018
        %1335 = vmatpush1.bf16.xpose.msra.mxu0 %v1017
        %1336 = vmatprep.subr.bf16.mxu0 %v1022
        %1337 = vmatpush1.bf16.xpose.msra.mxu0 %v1021
        %1338 = vmatprep.subr.bf16.mxu0 %v1026
        %1339 = vmatpush1.bf16.xpose.msra.mxu0 %v1025
        %1340 = vmatprep.subr.bf16.mxu0 %v1030
        %1341 = vmatpush1.bf16.xpose.msra.mxu0 %v1029
        %1342 = vmatprep.subr.bf16.mxu0 %v1034
        %1343 = vmatpush1.bf16.xpose.msra.mxu0 %v1033
        %1344 = vmatprep.subr.bf16.mxu0 %v1038
        %1345 = vmatpush1.bf16.xpose.msra.mxu0 %v1037
        %1346 = vmatprep.subr.bf16.mxu0 %v1042
        %1347 = vmatpush1.bf16.xpose.msra.mxu0 %v1041
        %1348 = vmatprep.subr.bf16.mxu0 %v1046
        %1349 = vmatpush1.bf16.xpose.msra.mxu0 %v1045
        %1350 = vmatprep.subr.bf16.mxu0 %v1050
        %1351 = vmatpush1.bf16.xpose.msra.mxu0 %v1049
        %1352 = vmatprep.subr.bf16.mxu0 %v1054
        %1353 = vmatpush1.bf16.xpose.msra.mxu0 %v1053
        %1354 = vmatprep.subr.bf16.mxu0 %v1058
        %1355 = vmatpush1.bf16.xpose.msra.mxu0 %v1057
        %1356 = vmatprep.subr.bf16.mxu0 %v1062
        %1357 = vmatpush1.bf16.xpose.msra.mxu0 %v1061
        %1358 = vmatprep.subr.bf16.mxu0 %v1066
        %1359 = vmatpush1.bf16.xpose.msra.mxu0 %v1065
        %1360 = vmatprep.subr.bf16.mxu0 %v1070
        %1361 = vmatpush1.bf16.xpose.msra.mxu0 %v1069
        %1362 = vmatprep.subr.bf16.mxu0 %v1074
        %1363 = vmatpush1.bf16.xpose.msra.mxu0 %v1073
        %1364 = vmatprep.mubr.bf16.mxu0 %v694
        %1365 = vmatmul.mubr.bf16.gmra.mrb[0].mxu0 %v693
        %v1366 = vpop.f32.mrb[0].mxu0
        %v1367 = vadd.f32 %v1174, %v1366
        %v1368 = vpop.f32.mrb[0].mxu0
        %v1369 = vadd.f32 %v1176, %v1368
        %v1370 = vpop.f32.mrb[0].mxu0
        %v1371 = vadd.f32 %v1178, %v1370
        %v1372 = vpop.f32.mrb[0].mxu0
        %v1373 = vadd.f32 %v1180, %v1372
        %1374 = vmatprep.mubr.bf16.mxu0 %v698
        %1375 = vmatmul.mubr.bf16.gmra.mrb[0].mxu0 %v697
        %v1376 = vpop.f32.mrb[0].mxu0
        %v1377 = vadd.f32 %v1184, %v1376
        %v1378 = vpop.f32.mrb[0].mxu0
        %v1379 = vadd.f32 %v1186, %v1378
        %v1380 = vpop.f32.mrb[0].mxu0
        %v1381 = vadd.f32 %v1188, %v1380
        %v1382 = vpop.f32.mrb[0].mxu0
        %v1383 = vadd.f32 %v1190, %v1382
        %1384 = vmatprep.mubr.bf16.mxu0 %v702
        %1385 = vmatmul.mubr.bf16.gmra.mrb[0].mxu0 %v701
        %v1386 = vpop.f32.mrb[0].mxu0
        %v1387 = vadd.f32 %v1194, %v1386
        %v1388 = vpop.f32.mrb[0].mxu0
        %v1389 = vadd.f32 %v1196, %v1388
        %v1390 = vpop.f32.mrb[0].mxu0
        %v1391 = vadd.f32 %v1198, %v1390
        %v1392 = vpop.f32.mrb[0].mxu0
        %v1393 = vadd.f32 %v1200, %v1392
        %1394 = vmatprep.mubr.bf16.mxu0 %v706
        %1395 = vmatmul.mubr.bf16.gmra.mrb[0].mxu0 %v705
        %v1396 = vpop.f32.mrb[0].mxu0
        %v1397 = vadd.f32 %v1204, %v1396
        %v1398 = vpop.f32.mrb[0].mxu0
        %v1399 = vadd.f32 %v1206, %v1398
        %v1400 = vpop.f32.mrb[0].mxu0
        %v1401 = vadd.f32 %v1208, %v1400
        %v1402 = vpop.f32.mrb[0].mxu0
        %v1403 = vadd.f32 %v1210, %v1402
        %1404 = vmatprep.mubr.bf16.mxu0 %v710
        %1405 = vmatmul.mubr.bf16.gmra.mrb[0].mxu0 %v709
        %v1406 = vpop.f32.mrb[0].mxu0
        %v1407 = vadd.f32 %v1214, %v1406
        %v1408 = vpop.f32.mrb[0].mxu0
        %v1409 = vadd.f32 %v1216, %v1408
        %v1410 = vpop.f32.mrb[0].mxu0
        %v1411 = vadd.f32 %v1218, %v1410
        %v1412 = vpop.f32.mrb[0].mxu0
        %v1413 = vadd.f32 %v1220, %v1412
        %1414 = vmatprep.mubr.bf16.mxu0 %v714
        %1415 = vmatmul.mubr.bf16.gmra.mrb[0].mxu0 %v713
        %v1416 = vpop.f32.mrb[0].mxu0
        %v1417 = vadd.f32 %v1224, %v1416
        %v1418 = vpop.f32.mrb[0].mxu0
        %v1419 = vadd.f32 %v1226, %v1418
        %v1420 = vpop.f32.mrb[0].mxu0
        %v1421 = vadd.f32 %v1228, %v1420
        %v1422 = vpop.f32.mrb[0].mxu0
        %v1423 = vadd.f32 %v1230, %v1422
        %1424 = vmatprep.mubr.bf16.mxu0 %v718
        %1425 = vmatmul.mubr.bf16.gmra.mrb[0].mxu0 %v717
        %v1426 = vpop.f32.mrb[0].mxu0
        %v1427 = vadd.f32 %v1234, %v1426
        %v1428 = vpop.f32.mrb[0].mxu0
        %v1429 = vadd.f32 %v1236, %v1428
        %v1430 = vpop.f32.mrb[0].mxu0
        %v1431 = vadd.f32 %v1238, %v1430
        %v1432 = vpop.f32.mrb[0].mxu0
        %v1433 = vadd.f32 %v1240, %v1432
        %1434 = vmatprep.mubr.bf16.mxu0 %v722
        %1435 = vmatmul.mubr.bf16.gmra.mrb[0].mxu0 %v721
        %v1436 = vpop.f32.mrb[0].mxu0
        %v1437 = vadd.f32 %v1244, %v1436
        %v1438 = vpop.f32.mrb[0].mxu0
        %v1439 = vadd.f32 %v1246, %v1438
        %v1440 = vpop.f32.mrb[0].mxu0
        %v1441 = vadd.f32 %v1248, %v1440
        %v1442 = vpop.f32.mrb[0].mxu0
        %v1443 = vadd.f32 %v1250, %v1442
        %1444 = vmatprep.mubr.bf16.mxu0 %v726
        %1445 = vmatmul.mubr.bf16.gmra.mrb[0].mxu0 %v725
        %v1446 = vpop.f32.mrb[0].mxu0
        %v1447 = vadd.f32 %v1254, %v1446
        %v1448 = vpop.f32.mrb[0].mxu0
        %v1449 = vadd.f32 %v1256, %v1448
        %v1450 = vpop.f32.mrb[0].mxu0
        %v1451 = vadd.f32 %v1258, %v1450
        %v1452 = vpop.f32.mrb[0].mxu0
        %v1453 = vadd.f32 %v1260, %v1452
        %1454 = vmatprep.mubr.bf16.mxu0 %v730
        %1455 = vmatmul.mubr.bf16.gmra.mrb[0].mxu0 %v729
        %v1456 = vpop.f32.mrb[0].mxu0
        %v1457 = vadd.f32 %v1264, %v1456
        %v1458 = vpop.f32.mrb[0].mxu0
        %v1459 = vadd.f32 %v1266, %v1458
        %v1460 = vpop.f32.mrb[0].mxu0
        %v1461 = vadd.f32 %v1268, %v1460
        %v1462 = vpop.f32.mrb[0].mxu0
        %v1463 = vadd.f32 %v1270, %v1462
        %1464 = vmatprep.mubr.bf16.mxu0 %v734
        %1465 = vmatmul.mubr.bf16.gmra.mrb[0].mxu0 %v733
        %v1466 = vpop.f32.mrb[0].mxu0
        %v1467 = vadd.f32 %v1274, %v1466
        %v1468 = vpop.f32.mrb[0].mxu0
        %v1469 = vadd.f32 %v1276, %v1468
        %v1470 = vpop.f32.mrb[0].mxu0
        %v1471 = vadd.f32 %v1278, %v1470
        %v1472 = vpop.f32.mrb[0].mxu0
        %v1473 = vadd.f32 %v1280, %v1472
        %1474 = vmatprep.mubr.bf16.mxu0 %v738
        %1475 = vmatmul.mubr.bf16.gmra.mrb[0].mxu0 %v737
        %v1476 = vpop.f32.mrb[0].mxu0
        %v1477 = vadd.f32 %v1284, %v1476
        %v1478 = vpop.f32.mrb[0].mxu0
        %v1479 = vadd.f32 %v1286, %v1478
        %v1480 = vpop.f32.mrb[0].mxu0
        %v1481 = vadd.f32 %v1288, %v1480
        %v1482 = vpop.f32.mrb[0].mxu0
        %v1483 = vadd.f32 %v1290, %v1482
        %1484 = vmatprep.mubr.bf16.mxu0 %v742
        %1485 = vmatmul.mubr.bf16.gmra.mrb[0].mxu0 %v741
        %v1486 = vpop.f32.mrb[0].mxu0
        %v1487 = vadd.f32 %v1294, %v1486
        %v1488 = vpop.f32.mrb[0].mxu0
        %v1489 = vadd.f32 %v1296, %v1488
        %v1490 = vpop.f32.mrb[0].mxu0
        %v1491 = vadd.f32 %v1298, %v1490
        %v1492 = vpop.f32.mrb[0].mxu0
        %v1493 = vadd.f32 %v1300, %v1492
        %1494 = vmatprep.mubr.bf16.mxu0 %v746
        %1495 = vmatmul.mubr.bf16.gmra.mrb[0].mxu0 %v745
        %v1496 = vpop.f32.mrb[0].mxu0
        %v1497 = vadd.f32 %v1304, %v1496
        %v1498 = vpop.f32.mrb[0].mxu0
        %v1499 = vadd.f32 %v1306, %v1498
        %v1500 = vpop.f32.mrb[0].mxu0
        %v1501 = vadd.f32 %v1308, %v1500
        %v1502 = vpop.f32.mrb[0].mxu0
        %v1503 = vadd.f32 %v1310, %v1502
        %1504 = vmatprep.mubr.bf16.mxu0 %v750
        %1505 = vmatmul.mubr.bf16.gmra.mrb[0].mxu0 %v749
        %v1506 = vpop.f32.mrb[0].mxu0
        %v1507 = vadd.f32 %v1314, %v1506
        %v1508 = vpop.f32.mrb[0].mxu0
        %v1509 = vadd.f32 %v1316, %v1508
        %v1510 = vpop.f32.mrb[0].mxu0
        %v1511 = vadd.f32 %v1318, %v1510
        %v1512 = vpop.f32.mrb[0].mxu0
        %v1513 = vadd.f32 %v1320, %v1512
        %1514 = vmatprep.mubr.bf16.mxu0 %v754
        %1515 = vmatmul.mubr.bf16.gmra.mrb[0].mxu0 %v753
        %v1516 = vpop.f32.mrb[0].mxu0
        %v1517 = vadd.f32 %v1324, %v1516
        %v1518 = vpop.f32.mrb[0].mxu0
        %v1519 = vadd.f32 %v1326, %v1518
        %v1520 = vpop.f32.mrb[0].mxu0
        %v1521 = vadd.f32 %v1328, %v1520
        %v1522 = vpop.f32.mrb[0].mxu0
        %v1523 = vadd.f32 %v1330, %v1522
        %1524 = vdwg.mxu0
        %v1525 = vadd.f32 %v307, %v1367
        %v1526 = vadd.f32 %v308, %v1369
        %v1527 = vadd.f32 %v309, %v1371
        %v1528 = vadd.f32 %v310, %v1373
        %v1529 = vadd.f32 %v311, %v1377
        %v1530 = vadd.f32 %v312, %v1379
        %v1531 = vadd.f32 %v313, %v1381
        %v1532 = vadd.f32 %v314, %v1383
        %v1533 = vadd.f32 %v315, %v1387
        %v1534 = vadd.f32 %v316, %v1389
        %v1535 = vadd.f32 %v317, %v1391
        %v1536 = vadd.f32 %v318, %v1393
        %v1537 = vadd.f32 %v319, %v1397
        %v1538 = vadd.f32 %v320, %v1399
        %v1539 = vadd.f32 %v321, %v1401
        %v1540 = vadd.f32 %v322, %v1403
        %v1541 = vadd.f32 %v323, %v1407
        %v1542 = vadd.f32 %v324, %v1409
        %v1543 = vadd.f32 %v325, %v1411
        %v1544 = vadd.f32 %v326, %v1413
        %v1545 = vadd.f32 %v327, %v1417
        %v1546 = vadd.f32 %v328, %v1419
        %v1547 = vadd.f32 %v329, %v1421
        %v1548 = vadd.f32 %v330, %v1423
        %v1549 = vadd.f32 %v331, %v1427
        %v1550 = vadd.f32 %v332, %v1429
        %v1551 = vadd.f32 %v333, %v1431
        %v1552 = vadd.f32 %v334, %v1433
        %v1553 = vadd.f32 %v335, %v1437
        %v1554 = vadd.f32 %v336, %v1439
        %v1555 = vadd.f32 %v337, %v1441
        %v1556 = vadd.f32 %v338, %v1443
        %v1557 = vadd.f32 %v339, %v1447
        %v1558 = vadd.f32 %v340, %v1449
        %v1559 = vadd.f32 %v341, %v1451
        %v1560 = vadd.f32 %v342, %v1453
        %v1561 = vadd.f32 %v343, %v1457
        %v1562 = vadd.f32 %v344, %v1459
        %v1563 = vadd.f32 %v345, %v1461
        %v1564 = vadd.f32 %v346, %v1463
        %v1565 = vadd.f32 %v347, %v1467
        %v1566 = vadd.f32 %v348, %v1469
        %v1567 = vadd.f32 %v349, %v1471
        %v1568 = vadd.f32 %v350, %v1473
        %v1569 = vadd.f32 %v351, %v1477
        %v1570 = vadd.f32 %v352, %v1479
        %v1571 = vadd.f32 %v353, %v1481
        %v1572 = vadd.f32 %v354, %v1483
        %v1573 = vadd.f32 %v355, %v1487
        %v1574 = vadd.f32 %v356, %v1489
        %v1575 = vadd.f32 %v357, %v1491
        %v1576 = vadd.f32 %v358, %v1493
        %v1577 = vadd.f32 %v359, %v1497
        %v1578 = vadd.f32 %v360, %v1499
        %v1579 = vadd.f32 %v361, %v1501
        %v1580 = vadd.f32 %v362, %v1503
        %v1581 = vadd.f32 %v363, %v1507
        %v1582 = vadd.f32 %v364, %v1509
        %v1583 = vadd.f32 %v365, %v1511
        %v1584 = vadd.f32 %v366, %v1513
        %v1585 = vadd.f32 %v367, %v1517
        %v1586 = vadd.f32 %v368, %v1519
        %v1587 = vadd.f32 %v369, %v1521
        %v1588 = vadd.f32 %v370, %v1523
        %1589 = vst [vmem:[#allocation2] sm:$0xff] %v1525
        %1590 = vst [vmem:[#allocation2 + $0x8] sm:$0xff] %v1526
        %1591 = vst [vmem:[#allocation2 + $0x10] sm:$0xff] %v1527
        %1592 = vst [vmem:[#allocation2 + $0x18] sm:$0xff] %v1528
        %1593 = vst [vmem:[#allocation2 + $0x20] sm:$0xff] %v1529
        %1594 = vst [vmem:[#allocation2 + $0x28] sm:$0xff] %v1530
        %1595 = vst [vmem:[#allocation2 + $0x30] sm:$0xff] %v1531
        %1596 = vst [vmem:[#allocation2 + $0x38] sm:$0xff] %v1532
        %1597 = vst [vmem:[#allocation2 + $0x40] sm:$0xff] %v1533
        %1598 = vst [vmem:[#allocation2 + $0x48] sm:$0xff] %v1534
        %1599 = vst [vmem:[#allocation2 + $0x50] sm:$0xff] %v1535
        %1600 = vst [vmem:[#allocation2 + $0x58] sm:$0xff] %v1536
        %1601 = vst [vmem:[#allocation2 + $0x60] sm:$0xff] %v1537
        %1602 = vst [vmem:[#allocation2 + $0x68] sm:$0xff] %v1538
        %1603 = vst [vmem:[#allocation2 + $0x70] sm:$0xff] %v1539
        %1604 = vst [vmem:[#allocation2 + $0x78] sm:$0xff] %v1540
        %1605 = vst [vmem:[#allocation2 + $0x80] sm:$0xff] %v1541
        %1606 = vst [vmem:[#allocation2 + $0x88] sm:$0xff] %v1542
        %1607 = vst [vmem:[#allocation2 + $0x90] sm:$0xff] %v1543
        %1608 = vst [vmem:[#allocation2 + $0x98] sm:$0xff] %v1544
        %1609 = vst [vmem:[#allocation2 + $0xa0] sm:$0xff] %v1545
        %1610 = vst [vmem:[#allocation2 + $0xa8] sm:$0xff] %v1546
        %1611 = vst [vmem:[#allocation2 + $0xb0] sm:$0xff] %v1547
        %1612 = vst [vmem:[#allocation2 + $0xb8] sm:$0xff] %v1548
        %1613 = vst [vmem:[#allocation2 + $0xc0] sm:$0xff] %v1549
        %1614 = vst [vmem:[#allocation2 + $0xc8] sm:$0xff] %v1550
        %1615 = vst [vmem:[#allocation2 + $0xd0] sm:$0xff] %v1551
        %1616 = vst [vmem:[#allocation2 + $0xd8] sm:$0xff] %v1552
        %1617 = vst [vmem:[#allocation2 + $0xe0] sm:$0xff] %v1553
        %1618 = vst [vmem:[#allocation2 + $0xe8] sm:$0xff] %v1554
        %1619 = vst [vmem:[#allocation2 + $0xf0] sm:$0xff] %v1555
        %1620 = vst [vmem:[#allocation2 + $0xf8] sm:$0xff] %v1556
        %1621 = vst [vmem:[#allocation2 + $0x100] sm:$0xff] %v1557
        %1622 = vst [vmem:[#allocation2 + $0x108] sm:$0xff] %v1558
        %1623 = vst [vmem:[#allocation2 + $0x110] sm:$0xff] %v1559
        %1624 = vst [vmem:[#allocation2 + $0x118] sm:$0xff] %v1560
        %1625 = vst [vmem:[#allocation2 + $0x120] sm:$0xff] %v1561
        %1626 = vst [vmem:[#allocation2 + $0x128] sm:$0xff] %v1562
        %1627 = vst [vmem:[#allocation2 + $0x130] sm:$0xff] %v1563
        %1628 = vst [vmem:[#allocation2 + $0x138] sm:$0xff] %v1564
        %1629 = vst [vmem:[#allocation2 + $0x140] sm:$0xff] %v1565
        %1630 = vst [vmem:[#allocation2 + $0x148] sm:$0xff] %v1566
        %1631 = vst [vmem:[#allocation2 + $0x150] sm:$0xff] %v1567
        %1632 = vst [vmem:[#allocation2 + $0x158] sm:$0xff] %v1568
        %1633 = vst [vmem:[#allocation2 + $0x160] sm:$0xff] %v1569
        %1634 = vst [vmem:[#allocation2 + $0x168] sm:$0xff] %v1570
        %1635 = vst [vmem:[#allocation2 + $0x170] sm:$0xff] %v1571
        %1636 = vst [vmem:[#allocation2 + $0x178] sm:$0xff] %v1572
        %1637 = vst [vmem:[#allocation2 + $0x180] sm:$0xff] %v1573
        %1638 = vst [vmem:[#allocation2 + $0x188] sm:$0xff] %v1574
        %1639 = vst [vmem:[#allocation2 + $0x190] sm:$0xff] %v1575
        %1640 = vst [vmem:[#allocation2 + $0x198] sm:$0xff] %v1576
        %1641 = vst [vmem:[#allocation2 + $0x1a0] sm:$0xff] %v1577
        %1642 = vst [vmem:[#allocation2 + $0x1a8] sm:$0xff] %v1578
        %1643 = vst [vmem:[#allocation2 + $0x1b0] sm:$0xff] %v1579
        %1644 = vst [vmem:[#allocation2 + $0x1b8] sm:$0xff] %v1580
        %1645 = vst [vmem:[#allocation2 + $0x1c0] sm:$0xff] %v1581
        %1646 = vst [vmem:[#allocation2 + $0x1c8] sm:$0xff] %v1582
        %1647 = vst [vmem:[#allocation2 + $0x1d0] sm:$0xff] %v1583
        %1648 = vst [vmem:[#allocation2 + $0x1d8] sm:$0xff] %v1584
        %1649 = vst [vmem:[#allocation2 + $0x1e0] sm:$0xff] %v1585
        %1650 = vst [vmem:[#allocation2 + $0x1e8] sm:$0xff] %v1586
        %1651 = vst [vmem:[#allocation2 + $0x1f0] sm:$0xff] %v1587
        %1652 = vst [vmem:[#allocation2 + $0x1f8] sm:$0xff] %v1588
        // Predicated region
        $region41: #{tpu_custom_call.1} parent=27 // pred_check
          %p1653 = pneg %p239
        $region42: #{tpu_custom_call.1} parent=27 // pred_check_branch
          %1655 = sbr.rel (%p1653) target = $region44
        $region43: #{tpu_custom_call.1} parent=27 // pred_region
          %v1656 = vld [vmem:[#allocation2] sm:$0xff]
          %v1657 = vld [vmem:[#allocation2 + $0x8] sm:$0xff]
          %v1658 = vld [vmem:[#allocation2 + $0x10] sm:$0xff]
          %v1659 = vld [vmem:[#allocation2 + $0x18] sm:$0xff]
          %v1660 = vld [vmem:[#allocation2 + $0x20] sm:$0xff]
          %v1661 = vld [vmem:[#allocation2 + $0x28] sm:$0xff]
          %v1662 = vld [vmem:[#allocation2 + $0x30] sm:$0xff]
          %v1663 = vld [vmem:[#allocation2 + $0x38] sm:$0xff]
          %v1664 = vld [vmem:[#allocation2 + $0x40] sm:$0xff]
          %v1665 = vld [vmem:[#allocation2 + $0x48] sm:$0xff]
          %v1666 = vld [vmem:[#allocation2 + $0x50] sm:$0xff]
          %v1667 = vld [vmem:[#allocation2 + $0x58] sm:$0xff]
          %v1668 = vld [vmem:[#allocation2 + $0x60] sm:$0xff]
          %v1669 = vld [vmem:[#allocation2 + $0x68] sm:$0xff]
          %v1670 = vld [vmem:[#allocation2 + $0x70] sm:$0xff]
          %v1671 = vld [vmem:[#allocation2 + $0x78] sm:$0xff]
          %v1672 = vld [vmem:[#allocation2 + $0x80] sm:$0xff]
          %v1673 = vld [vmem:[#allocation2 + $0x88] sm:$0xff]
          %v1674 = vld [vmem:[#allocation2 + $0x90] sm:$0xff]
          %v1675 = vld [vmem:[#allocation2 + $0x98] sm:$0xff]
          %v1676 = vld [vmem:[#allocation2 + $0xa0] sm:$0xff]
          %v1677 = vld [vmem:[#allocation2 + $0xa8] sm:$0xff]
          %v1678 = vld [vmem:[#allocation2 + $0xb0] sm:$0xff]
          %v1679 = vld [vmem:[#allocation2 + $0xb8] sm:$0xff]
          %v1680 = vld [vmem:[#allocation2 + $0xc0] sm:$0xff]
          %v1681 = vld [vmem:[#allocation2 + $0xc8] sm:$0xff]
          %v1682 = vld [vmem:[#allocation2 + $0xd0] sm:$0xff]
          %v1683 = vld [vmem:[#allocation2 + $0xd8] sm:$0xff]
          %v1684 = vld [vmem:[#allocation2 + $0xe0] sm:$0xff]
          %v1685 = vld [vmem:[#allocation2 + $0xe8] sm:$0xff]
          %v1686 = vld [vmem:[#allocation2 + $0xf0] sm:$0xff]
          %v1687 = vld [vmem:[#allocation2 + $0xf8] sm:$0xff]
          %v1688 = vld [vmem:[#allocation2 + $0x100] sm:$0xff]
          %v1689 = vld [vmem:[#allocation2 + $0x108] sm:$0xff]
          %v1690 = vld [vmem:[#allocation2 + $0x110] sm:$0xff]
          %v1691 = vld [vmem:[#allocation2 + $0x118] sm:$0xff]
          %v1692 = vld [vmem:[#allocation2 + $0x120] sm:$0xff]
          %v1693 = vld [vmem:[#allocation2 + $0x128] sm:$0xff]
          %v1694 = vld [vmem:[#allocation2 + $0x130] sm:$0xff]
          %v1695 = vld [vmem:[#allocation2 + $0x138] sm:$0xff]
          %v1696 = vld [vmem:[#allocation2 + $0x140] sm:$0xff]
          %v1697 = vld [vmem:[#allocation2 + $0x148] sm:$0xff]
          %v1698 = vld [vmem:[#allocation2 + $0x150] sm:$0xff]
          %v1699 = vld [vmem:[#allocation2 + $0x158] sm:$0xff]
          %v1700 = vld [vmem:[#allocation2 + $0x160] sm:$0xff]
          %v1701 = vld [vmem:[#allocation2 + $0x168] sm:$0xff]
          %v1702 = vld [vmem:[#allocation2 + $0x170] sm:$0xff]
          %v1703 = vld [vmem:[#allocation2 + $0x178] sm:$0xff]
          %v1704 = vld [vmem:[#allocation2 + $0x180] sm:$0xff]
          %v1705 = vld [vmem:[#allocation2 + $0x188] sm:$0xff]
          %v1706 = vld [vmem:[#allocation2 + $0x190] sm:$0xff]
          %v1707 = vld [vmem:[#allocation2 + $0x198] sm:$0xff]
          %v1708 = vld [vmem:[#allocation2 + $0x1a0] sm:$0xff]
          %v1709 = vld [vmem:[#allocation2 + $0x1a8] sm:$0xff]
          %v1710 = vld [vmem:[#allocation2 + $0x1b0] sm:$0xff]
          %v1711 = vld [vmem:[#allocation2 + $0x1b8] sm:$0xff]
          %v1712 = vld [vmem:[#allocation2 + $0x1c0] sm:$0xff]
          %v1713 = vld [vmem:[#allocation2 + $0x1c8] sm:$0xff]
          %v1714 = vld [vmem:[#allocation2 + $0x1d0] sm:$0xff]
          %v1715 = vld [vmem:[#allocation2 + $0x1d8] sm:$0xff]
          %v1716 = vld [vmem:[#allocation2 + $0x1e0] sm:$0xff]
          %v1717 = vld [vmem:[#allocation2 + $0x1e8] sm:$0xff]
          %v1718 = vld [vmem:[#allocation2 + $0x1f0] sm:$0xff]
          %v1719 = vld [vmem:[#allocation2 + $0x1f8] sm:$0xff]
          %v1720 = vpack.c.bf16 %v1658, %v1656
          %v1721 = vpack.c.bf16 %v1659, %v1657
          %v1722 = vpack.c.bf16 %v1662, %v1660
          %v1723 = vpack.c.bf16 %v1663, %v1661
          %v1724 = vpack.c.bf16 %v1666, %v1664
          %v1725 = vpack.c.bf16 %v1667, %v1665
          %v1726 = vpack.c.bf16 %v1670, %v1668
          %v1727 = vpack.c.bf16 %v1671, %v1669
          %v1728 = vpack.c.bf16 %v1674, %v1672
          %v1729 = vpack.c.bf16 %v1675, %v1673
          %v1730 = vpack.c.bf16 %v1678, %v1676
          %v1731 = vpack.c.bf16 %v1679, %v1677
          %v1732 = vpack.c.bf16 %v1682, %v1680
          %v1733 = vpack.c.bf16 %v1683, %v1681
          %v1734 = vpack.c.bf16 %v1686, %v1684
          %v1735 = vpack.c.bf16 %v1687, %v1685
          %v1736 = vpack.c.bf16 %v1690, %v1688
          %v1737 = vpack.c.bf16 %v1691, %v1689
          %v1738 = vpack.c.bf16 %v1694, %v1692
          %v1739 = vpack.c.bf16 %v1695, %v1693
          %v1740 = vpack.c.bf16 %v1698, %v1696
          %v1741 = vpack.c.bf16 %v1699, %v1697
          %v1742 = vpack.c.bf16 %v1702, %v1700
          %v1743 = vpack.c.bf16 %v1703, %v1701
          %v1744 = vpack.c.bf16 %v1706, %v1704
          %v1745 = vpack.c.bf16 %v1707, %v1705
          %v1746 = vpack.c.bf16 %v1710, %v1708
          %v1747 = vpack.c.bf16 %v1711, %v1709
          %v1748 = vpack.c.bf16 %v1714, %v1712
          %v1749 = vpack.c.bf16 %v1715, %v1713
          %v1750 = vpack.c.bf16 %v1718, %v1716
          %v1751 = vpack.c.bf16 %v1719, %v1717
          %v1784 = vunpack.c.l.b16 %v1720
          %v1785 = vunpack.c.l.b16 %v1721
          %v1786 = vunpack.c.h.b16 %v1720
          %v1787 = vunpack.c.h.b16 %v1721
          %v1788 = vunpack.c.l.b16 %v1722
          %v1789 = vunpack.c.l.b16 %v1723
          %v1790 = vunpack.c.h.b16 %v1722
          %v1791 = vunpack.c.h.b16 %v1723
          %v1792 = vunpack.c.l.b16 %v1724
          %v1793 = vunpack.c.l.b16 %v1725
          %v1794 = vunpack.c.h.b16 %v1724
          %v1795 = vunpack.c.h.b16 %v1725
          %v1796 = vunpack.c.l.b16 %v1726
          %v1797 = vunpack.c.l.b16 %v1727
          %v1798 = vunpack.c.h.b16 %v1726
          %v1799 = vunpack.c.h.b16 %v1727
          %v1800 = vunpack.c.l.b16 %v1728
          %v1801 = vunpack.c.l.b16 %v1729
          %v1802 = vunpack.c.h.b16 %v1728
          %v1803 = vunpack.c.h.b16 %v1729
          %v1804 = vunpack.c.l.b16 %v1730
          %v1805 = vunpack.c.l.b16 %v1731
          %v1806 = vunpack.c.h.b16 %v1730
          %v1807 = vunpack.c.h.b16 %v1731
          %v1808 = vunpack.c.l.b16 %v1732
          %v1809 = vunpack.c.l.b16 %v1733
          %v1810 = vunpack.c.h.b16 %v1732
          %v1811 = vunpack.c.h.b16 %v1733
          %v1812 = vunpack.c.l.b16 %v1734
          %v1813 = vunpack.c.l.b16 %v1735
          %v1814 = vunpack.c.h.b16 %v1734
          %v1815 = vunpack.c.h.b16 %v1735
          %v1816 = vunpack.c.l.b16 %v1736
          %v1817 = vunpack.c.l.b16 %v1737
          %v1818 = vunpack.c.h.b16 %v1736
          %v1819 = vunpack.c.h.b16 %v1737
          %v1820 = vunpack.c.l.b16 %v1738
          %v1821 = vunpack.c.l.b16 %v1739
          %v1822 = vunpack.c.h.b16 %v1738
          %v1823 = vunpack.c.h.b16 %v1739
          %v1824 = vunpack.c.l.b16 %v1740
          %v1825 = vunpack.c.l.b16 %v1741
          %v1826 = vunpack.c.h.b16 %v1740
          %v1827 = vunpack.c.h.b16 %v1741
          %v1828 = vunpack.c.l.b16 %v1742
          %v1829 = vunpack.c.l.b16 %v1743
          %v1830 = vunpack.c.h.b16 %v1742
          %v1831 = vunpack.c.h.b16 %v1743
          %v1832 = vunpack.c.l.b16 %v1744
          %v1833 = vunpack.c.l.b16 %v1745
          %v1834 = vunpack.c.h.b16 %v1744
          %v1835 = vunpack.c.h.b16 %v1745
          %v1836 = vunpack.c.l.b16 %v1746
          %v1837 = vunpack.c.l.b16 %v1747
          %v1838 = vunpack.c.h.b16 %v1746
          %v1839 = vunpack.c.h.b16 %v1747
          %v1840 = vunpack.c.l.b16 %v1748
          %v1841 = vunpack.c.l.b16 %v1749
          %v1842 = vunpack.c.h.b16 %v1748
          %v1843 = vunpack.c.h.b16 %v1749
          %v1844 = vunpack.c.l.b16 %v1750
          %v1845 = vunpack.c.l.b16 %v1751
          %v1846 = vunpack.c.h.b16 %v1750
          %v1847 = vunpack.c.h.b16 %v1751
          %v1848 = vpack.c.b16 %v1785, %v1784
          %v1849 = vpack.c.b16 %v1787, %v1786
          %v1850 = vpack.c.b16 %v1789, %v1788
          %v1851 = vpack.c.b16 %v1791, %v1790
          %v1852 = vpack.c.b16 %v1793, %v1792
          %v1853 = vpack.c.b16 %v1795, %v1794
          %v1854 = vpack.c.b16 %v1797, %v1796
          %v1855 = vpack.c.b16 %v1799, %v1798
          %v1856 = vpack.c.b16 %v1801, %v1800
          %v1857 = vpack.c.b16 %v1803, %v1802
          %v1858 = vpack.c.b16 %v1805, %v1804
          %v1859 = vpack.c.b16 %v1807, %v1806
          %v1860 = vpack.c.b16 %v1809, %v1808
          %v1861 = vpack.c.b16 %v1811, %v1810
          %v1862 = vpack.c.b16 %v1813, %v1812
          %v1863 = vpack.c.b16 %v1815, %v1814
          %v1864 = vpack.c.b16 %v1817, %v1816
          %v1865 = vpack.c.b16 %v1819, %v1818
          %v1866 = vpack.c.b16 %v1821, %v1820
          %v1867 = vpack.c.b16 %v1823, %v1822
          %v1868 = vpack.c.b16 %v1825, %v1824
          %v1869 = vpack.c.b16 %v1827, %v1826
          %v1870 = vpack.c.b16 %v1829, %v1828
          %v1871 = vpack.c.b16 %v1831, %v1830
          %v1872 = vpack.c.b16 %v1833, %v1832
          %v1873 = vpack.c.b16 %v1835, %v1834
          %v1874 = vpack.c.b16 %v1837, %v1836
          %v1875 = vpack.c.b16 %v1839, %v1838
          %v1876 = vpack.c.b16 %v1841, %v1840
          %v1877 = vpack.c.b16 %v1843, %v1842
          %v1878 = vpack.c.b16 %v1845, %v1844
          %v1879 = vpack.c.b16 %v1847, %v1846
          %1912 = vst [vmem:[%s232] sm:$0xff] %v1848
          %1913 = vst [vmem:[%s232 + $0x8] sm:$0xff] %v1849
          %1914 = vst [vmem:[%s232 + $0x10] sm:$0xff] %v1850
          %1915 = vst [vmem:[%s232 + $0x18] sm:$0xff] %v1851
          %1916 = vst [vmem:[%s232 + $0x20] sm:$0xff] %v1852
          %1917 = vst [vmem:[%s232 + $0x28] sm:$0xff] %v1853
          %1918 = vst [vmem:[%s232 + $0x30] sm:$0xff] %v1854
          %1919 = vst [vmem:[%s232 + $0x38] sm:$0xff] %v1855
          %1920 = vst [vmem:[%s232 + $0x40] sm:$0xff] %v1856
          %1921 = vst [vmem:[%s232 + $0x48] sm:$0xff] %v1857
          %1922 = vst [vmem:[%s232 + $0x50] sm:$0xff] %v1858
          %1923 = vst [vmem:[%s232 + $0x58] sm:$0xff] %v1859
          %1924 = vst [vmem:[%s232 + $0x60] sm:$0xff] %v1860
          %1925 = vst [vmem:[%s232 + $0x68] sm:$0xff] %v1861
          %1926 = vst [vmem:[%s232 + $0x70] sm:$0xff] %v1862
          %1927 = vst [vmem:[%s232 + $0x78] sm:$0xff] %v1863
          %1928 = vst [vmem:[%s232 + $0x80] sm:$0xff] %v1864
          %1929 = vst [vmem:[%s232 + $0x88] sm:$0xff] %v1865
          %1930 = vst [vmem:[%s232 + $0x90] sm:$0xff] %v1866
          %1931 = vst [vmem:[%s232 + $0x98] sm:$0xff] %v1867
          %1932 = vst [vmem:[%s232 + $0xa0] sm:$0xff] %v1868
          %1933 = vst [vmem:[%s232 + $0xa8] sm:$0xff] %v1869
          %1934 = vst [vmem:[%s232 + $0xb0] sm:$0xff] %v1870
          %1935 = vst [vmem:[%s232 + $0xb8] sm:$0xff] %v1871
          %1936 = vst [vmem:[%s232 + $0xc0] sm:$0xff] %v1872
          %1937 = vst [vmem:[%s232 + $0xc8] sm:$0xff] %v1873
          %1938 = vst [vmem:[%s232 + $0xd0] sm:$0xff] %v1874
          %1939 = vst [vmem:[%s232 + $0xd8] sm:$0xff] %v1875
          %1940 = vst [vmem:[%s232 + $0xe0] sm:$0xff] %v1876
          %1941 = vst [vmem:[%s232 + $0xe8] sm:$0xff] %v1877
          %1942 = vst [vmem:[%s232 + $0xf0] sm:$0xff] %v1878
          %1943 = vst [vmem:[%s232 + $0xf8] sm:$0xff] %v1879
        $region44: #{tpu_custom_call.1} parent=27 // pred_fallthru
          _
        %s1944 = sand.u32 %s107, 1
        %s1945 = scalar_lea.sflag [#allocation5], %s1944
        %s1946 = sand.u32 %s107, 1
        %s1947 = smul.addr %s1946, 256
        %s1948 = scalar_lea.vmem [#allocation8], %s1947
        // Predicated region
        $region45: #{tpu_custom_call.1} parent=27 // pred_check
          %p1949 = pneg %p117
        $region46: #{tpu_custom_call.1} parent=27 // pred_check_branch
          %1951 = sbr.rel (%p1949) target = $region48
        $region47: #{tpu_custom_call.1} parent=27 // pred_region
          %s1952 = smul.u32 32, %s27
          %s1953 = smul.u32 2, %s28
          %s1955 = ssub.s32 4096, 4096
          %1956 = vsyncadd %s1945, %s1955
          %s1957 = smul.addr %s1952, 12
          %s1958 = sadd.s32 %s1953, %s1957
          %s1959 = smul.addr %s1958, 64
          %s1960 = scalar_lea.hbm %s2, %s1959
          %s1961 = sshll.u32 %s1948, 4
          %s1962 = int_to_ptr.vmem [resolvable:$true] %s1961
          %1967 = dma.vmem_to_hbm [thread:$0]  %s1962, 4096, %s1960, %s1945, 128, 768, 8
        $region48: #{tpu_custom_call.1} parent=27 // pred_fallthru
          _
      $region28: #{tpu_custom_call.1} parent=5 // pred_fallthru
        _
      %p1968 = scmp.le.s32.totalorder 2, %s17
      // Predicated region
      $region49: #{tpu_custom_call.1} parent=5 // pred_check
        %p1969 = pneg %p1968
      $region50: #{tpu_custom_call.1} parent=5 // pred_check_branch
        %1971 = sbr.rel (%p1969) target = $region52
      $region51: #{tpu_custom_call.1} parent=5 // pred_region
        %s1972 = ssub.s32 %s17, 2
        // Predicated region
        $region53: #{tpu_custom_call.1} parent=51 // pred_check
          %p1973 = pneg %p123
        $region54: #{tpu_custom_call.1} parent=51 // pred_check_branch
          %1975 = sbr.rel (%p1973) target = $region56
        $region55: #{tpu_custom_call.1} parent=51 // pred_region
          %s1976 = sand.u32 %s108, 1
          %s1977 = scalar_lea.sflag [#allocation5], %s1976
          %s1978 = sand.u32 %s108, 1
          %s1979 = smul.addr %s1978, 256
          %s1980 = scalar_lea.vmem [#allocation8], %s1979
          %1981 = dma.done %s1977, 4096
        $region56: #{tpu_custom_call.1} parent=51 // pred_fallthru
          _
      $region52: #{tpu_custom_call.1} parent=5 // pred_fallthru
        _
    $region6: #{tpu_custom_call.1} parent=1 // loop_footer
      %s21 = sadd.s32 1, %s17
    $region7: #{tpu_custom_call.1} parent=1 // loop_footer_branch
      %16 = sbr.rel target = $region3
    $region8: #{tpu_custom_call.1} parent=1 // loop_exit
      _
    %1982 = vsyncpa [#allocation4], 1
    %s1983 = scalar_lea.sflag [#allocation4], 1
    %1984 = vsyncpa %s1983, 1
    %1985 = vsyncpa [#allocation7], 1
    %s1986 = scalar_lea.sflag [#allocation7], 1
    %1987 = vsyncpa %s1986, 1
    %1988 = vsyncpa [#allocation5], 1
    %s1989 = scalar_lea.sflag [#allocation5], 1
    %1990 = vsyncpa %s1989, 1

</llo_original>
